<compile_context>
chip_gen: v5e
topology: v5e:2x2
jax: 0.10.0
libtpu: 0.0.40
codegen_flags: <defaults>
</compile_context>

<pallas_src>
import numpy as np
import jax
import jax.numpy as jnp
from jax.experimental import pallas as pl
from jax.experimental.pallas import tpu as pltpu


# ----------------------------------------------------------------------------
# Host-side construction of resize operators (trace-time constants).
# ----------------------------------------------------------------------------
def _bilinear_matrix(in_size, out_size):
    """(out_size, in_size) matrix reproducing F.interpolate(bilinear, align_corners=True)."""
    m = np.zeros((out_size, in_size), dtype=np.float32)
    if out_size == 1:
        m[0, 0] = 1.0
        return m
    scale = (in_size - 1) / (out_size - 1)
    for i in range(out_size):
        src = i * scale
        i0 = min(int(np.floor(src)), in_size - 1)
        i1 = min(i0 + 1, in_size - 1)
        w1 = src - i0
        m[i, i0] += 1.0 - w1
        m[i, i1] += w1
    return m


def _nearest_matrix(in_size, out_size):
    """(out_size, in_size) 0/1 matrix reproducing F.interpolate(nearest)."""
    m = np.zeros((out_size, in_size), dtype=np.float32)
    scale = in_size / out_size
    for i in range(out_size):
        src = min(int(np.floor(i * scale)), in_size - 1)
        m[i, src] = 1.0
    return m


def _nearest_col_select(in_size, out_size, stride):
    """(in_size, out_size) 0/1 right-multiply matrix selecting column stride*j."""
    m = np.zeros((in_size, out_size), dtype=np.float32)
    for j in range(out_size):
        m[stride * j, j] = 1.0
    return m


def _default_weights(scales):
    w = [1.0 / 2 ** i for i in range(scales)]
    s = sum(w)
    return [x / s for x in w]


# ----------------------------------------------------------------------------
# Pallas kernel (one batch image per grid step).
# ----------------------------------------------------------------------------
def _make_kernel(scales, n_mats, fast_mask, H):
    has_scratch = fast_mask and scales > 1

    def kernel(pred_ref, tgt_ref, *rest):
        mat_refs = rest[:n_mats]
        out_ref = rest[n_mats]                       # VMEM (1, 1, 3*scales)
        mask_scr = rest[n_mats + 1] if has_scratch else None

        pred = pred_ref[...].astype(jnp.float32)     # (H, W)  elementwise math in f32
        tgt = tgt_ref[...].astype(jnp.float32)
        mask = (tgt > 0.0).astype(jnp.float32)
        if mask_scr is not None:
            mask_scr[...] = mask                     # full-res mask, strided reads below

        stats = []
        k = 0
        for s in range(scales):
            pm = pred * mask
            tm = tgt * mask
            # one EUP log per pixel; approx EUP reciprocal instead of a true divide.
            # masked pixels -> ratio 1 -> log ~ 0 -> * mask == 0.
            diff = jnp.log((pm + 1e-6) * pl.reciprocal(tm + 1e-6, approx=True)) * mask
            stats.append(jnp.sum(mask))
            stats.append(jnp.sum(diff))
            stats.append(jnp.sum(diff * diff))

            if s == scales - 1:
                break

            cw = mat_refs[k][...]; k += 1            # (w_s, w_{s+1}) bilinear columns
            rh = mat_refs[k][...]; k += 1            # (h_{s+1}, h_s) bilinear rows
            dt = cw.dtype

            # pred / tgt resize: 4 plain matmuls sharing the two small matrices
            # (no block-diagonal zero padding, no lane-offset slices).
            p = jnp.dot(pred.astype(dt), cw, preferred_element_type=jnp.float32)
            pred = jnp.dot(rh, p.astype(dt), preferred_element_type=jnp.float32)
            t = jnp.dot(tgt.astype(dt), cw, preferred_element_type=jnp.float32)
            tgt = jnp.dot(rh, t.astype(dt), preferred_element_type=jnp.float32)

            if fast_mask:
                # nearest mask downsample: rows via sublane-strided read of the
                # scale-0 mask, columns via one 0/1 selection matmul (exact when
                # every intermediate size is even).
                cn = mat_refs[k][...]; k += 1        # (W, w_{s+1})
                stp = 1 << (s + 1)
                rows = mask_scr[pl.ds(0, H >> (s + 1), stride=stp), :]   # (h_{s+1}, W)
                mask = jnp.dot(rows.astype(cn.dtype), cn,
                               preferred_element_type=jnp.float32)
            else:
                # odd-size fallback: exact chained nearest row/col matmuls.
                cn = mat_refs[k][...]; k += 1        # (w_s, w_{s+1})
                rn = mat_refs[k][...]; k += 1        # (h_{s+1}, h_s)
                m1 = jnp.dot(mask.astype(cn.dtype), cn,
                             preferred_element_type=jnp.float32)
                mask = jnp.dot(rn, m1.astype(rn.dtype),
                               preferred_element_type=jnp.float32)

        # assemble the per-image partial-sum row; single full-block write.
        # (SMEM scalar-store epilogue was considered; kept the known-good VMEM
        #  row store -- 3*scales values written once per image is negligible.)
        lane = jax.lax.broadcasted_iota(jnp.int32, (1, 1, 3 * scales), 2)
        row = jnp.zeros((1, 1, 3 * scales), jnp.float32)
        for i, v in enumerate(stats):
            row = jnp.where(lane == i, v, row)
        out_ref[...] = row

    return kernel


# ----------------------------------------------------------------------------
# Wrapper
# ----------------------------------------------------------------------------
def multi_scale_ssi_loss(pred, target, alpha=0.5, scales=4, weights=None,
                         mxu_dtype=jnp.float32):
    """pred, target: (B, 1, H, W). Returns scalar f32 loss (matches the PyTorch module).

    mxu_dtype: dtype of the resize-matrix MXU operands.  Default f32 keeps the
    result within ~1e-4 of the f32 PyTorch reference; jnp.bfloat16 halves MXU
    passes / matrix bytes at ~0.2-0.4% resize error (opt-in).
    """
    if weights is None:
        weights = _default_weights(scales)
    assert len(weights) == scales

    B, C, H, W = pred.shape
    assert C == 1 and target.shape == pred.shape

    div = 1 << max(scales - 1, 0)
    fast_mask = scales > 1 and (H % div == 0) and (W % div == 0)

    # Resize matrices (resident in VMEM across the whole grid).
    mats = []
    sizes = [(H, W)]
    h, w = H, W
    for s in range(scales - 1):
        ho, wo = h // 2, w // 2
        mats.append(jnp.asarray(_bilinear_matrix(w, wo).T, mxu_dtype))       # (w, wo)
        mats.append(jnp.asarray(_bilinear_matrix(h, ho), mxu_dtype))         # (ho, h)
        if fast_mask:
            mats.append(jnp.asarray(_nearest_col_select(W, wo, 1 << (s + 1)),
                                    mxu_dtype))                              # (W, wo)
        else:
            mats.append(jnp.asarray(_nearest_matrix(w, wo).T, mxu_dtype))    # (w, wo)
            mats.append(jnp.asarray(_nearest_matrix(h, ho), mxu_dtype))      # (ho, h)
        h, w = ho, wo
        sizes.append((h, w))
    n_mats = len(mats)

    in_specs = [
        pl.BlockSpec((None, None, H, W), lambda b: (b, 0, 0, 0)),  # pred   (orig dtype)
        pl.BlockSpec((None, None, H, W), lambda b: (b, 0, 0, 0)),  # target (orig dtype)
    ]
    in_specs += [pl.BlockSpec(m.shape, lambda b: (0, 0)) for m in mats]
    out_spec = pl.BlockSpec((1, 1, 3 * scales), lambda b: (b, 0, 0))

    scratch = []
    if fast_mask:
        scratch.append(pltpu.VMEM((H, W), jnp.float32))            # scale-0 mask

    # ---- VMEM budget: leave headroom below physical VMEM (v7x: 64 MiB) but
    # ---- allow > 64 MiB working sets on v5e/v6e (128 MiB) for large images.
    itemsize = int(jnp.dtype(pred.dtype).itemsize)
    mat_itemsize = int(jnp.dtype(mxu_dtype).itemsize)
    pyr = sum(hh * ww for hh, ww in sizes)
    mat_bytes = sum(int(m.size) for m in mats) * mat_itemsize
    vmem_est = (2 * 2 * H * W * itemsize          # double-buffered pred/tgt input tiles
                + 2 * mat_bytes                   # resident matrices (double-buffered)
                + (4 * H * W if fast_mask else 0) # f32 mask scratch
                + 4 * (3 * pyr + 5 * H * W))      # f32 pyramid + scale-0 temporaries
    try:
        phys_vmem = int(pltpu.get_tpu_info().vmem_capacity_bytes)
    except Exception:
        phys_vmem = 64 * 1024 * 1024              # conservative (v7x) fallback
    vmem_limit = int(min(max(16 * 1024 * 1024, 2 * vmem_est), int(0.85 * phys_vmem)))

    # ---- cost estimate reflecting the restructured matmuls ----
    mm_flops = 0
    h, w = H, W
    for s in range(scales - 1):
        ho, wo = h // 2, w // 2
        mm_flops += 2 * 2 * (h * w * wo + ho * h * wo)    # pred + tgt bilinear
        if fast_mask:
            mm_flops += 2 * ho * W * wo                   # mask column selection
        else:
            mm_flops += 2 * (h * w * wo + ho * h * wo)    # chained nearest fallback
        h, w = ho, wo
    cost = pl.CostEstimate(
        flops=int(B * (mm_flops + 10 * pyr)),
        transcendentals=int(2 * B * pyr),                 # log + approx reciprocal
        bytes_accessed=int(2 * B * H * W * itemsize + mat_bytes + B * 3 * scales * 4),
    )

    partials = pl.pallas_call(
        _make_kernel(scales, n_mats, fast_mask, H),
        grid=(B,),
        in_specs=in_specs,
        out_specs=out_spec,
        out_shape=jax.ShapeDtypeStruct((B, 1, 3 * scales), jnp.float32),
        scratch_shapes=scratch,
        compiler_params=pltpu.CompilerParams(
            dimension_semantics=("parallel",),
            vmem_limit_bytes=vmem_limit,
        ),
        cost_estimate=cost,
    )(pred, target, *mats)

    # Finish the scalar math with batch-wide sums (matches the module exactly:
    # num_valid / diff_sum / diff_sqr_sum are over the whole batch per scale).
    totals = jnp.sum(partials, axis=(0, 1)).reshape(scales, 3)
    num_valid = totals[:, 0] + 1e-8
    diff_sum = totals[:, 1] / num_valid
    diff_sqr_sum = totals[:, 2] / num_valid
    per_scale = diff_sqr_sum - jnp.float32(alpha) * diff_sum * diff_sum
    return jnp.sum(jnp.asarray(weights, jnp.float32) * per_scale)


# ----------------------------------------------------------------------------
# Pure-numpy reference (same math as the PyTorch module).
# ----------------------------------------------------------------------------
def _reference(pred, target, alpha, weights, scales):
    pred = np.asarray(pred, np.float32)[:, 0]
    tgt = np.asarray(target, np.float32)[:, 0]
    mask = (tgt > 0).astype(np.float32)
    total = 0.0
    for s, w in enumerate(weights):
        pm = pred * mask
        tm = tgt * mask
        diff = (np.log(pm + 1e-6) - np.log(tm + 1e-6)) * mask
        nv = mask.sum() + 1e-8
        ds = diff.sum() / nv
        dss = (diff ** 2).sum() / nv
        total += w * (dss - alpha * ds ** 2)
        if s < scales - 1:
            H, W = pred.shape[1], pred.shape[2]
            rh = _bilinear_matrix(H, H // 2)
            rw = _bilinear_matrix(W, W // 2)
            rhn = _nearest_matrix(H, H // 2)
            rwn = _nearest_matrix(W, W // 2)
            pred = np.einsum('oh,bhw,pw->bop', rh, pred, rw)
            tgt = np.einsum('oh,bhw,pw->bop', rh, tgt, rw)
            mask = np.einsum('oh,bhw,pw->bop', rhn, mask, rwn)
    return total


if __name__ == "__main__":
    key = jax.random.PRNGKey(0)
    k1, k2, k3 = jax.random.split(key, 3)

    B, H, W = 2, 16, 16
    pred = jax.random.uniform(k1, (B, 1, H, W), jnp.float32, minval=0.1, maxval=2.0)
    target = jax.random.uniform(k2, (B, 1, H, W), jnp.float32, minval=0.0, maxval=2.0)
    holes = jax.random.uniform(k3, (B, 1, H, W)) < 0.2
    target = jnp.where(holes, 0.0, target)  # zero-depth pixels -> mask == 0

    alpha, scales = 0.5, 4
    weights = _default_weights(scales)

    loss = multi_scale_ssi_loss(pred, target, alpha=alpha, scales=scales, weights=weights)
    loss = jax.block_until_ready(loss)

    ref = _reference(np.asarray(pred), np.asarray(target), alpha, weights, scales)
    assert abs(float(loss) - float(ref)) <= 1e-3 * max(1.0, abs(float(ref))), (float(loss), float(ref))

    print("KERNEL_OK")
</pallas_src>

<mosaic_0001>
module attributes {stable_mosaic.version = 11 : i64} {
  func.func @kernel(%arg0: i32, %arg1: memref<1x1x16x16xf32, #tpu.memory_space<vmem>>, %arg2: memref<1x1x16x16xf32, #tpu.memory_space<vmem>>, %arg3: memref<16x8xf32, #tpu.memory_space<vmem>>, %arg4: memref<8x16xf32, #tpu.memory_space<vmem>>, %arg5: memref<16x8xf32, #tpu.memory_space<vmem>>, %arg6: memref<8x4xf32, #tpu.memory_space<vmem>>, %arg7: memref<4x8xf32, #tpu.memory_space<vmem>>, %arg8: memref<16x4xf32, #tpu.memory_space<vmem>>, %arg9: memref<4x2xf32, #tpu.memory_space<vmem>>, %arg10: memref<2x4xf32, #tpu.memory_space<vmem>>, %arg11: memref<16x2xf32, #tpu.memory_space<vmem>>, %arg12: memref<1x1x12xf32, #tpu.memory_space<vmem>>, %arg13: memref<16x16xf32, #tpu.memory_space<vmem>>) attributes {dimension_semantics = [#tpu.dimension_semantics<parallel>], iteration_bounds = array<i64: 2>, scalar_prefetch = 0 : i64, scratch_operands = 1 : i64, tpu.core_type = #tpu.core_type<tc>, window_params = [{transform_indices = @transform_0, window_bounds = array<i64: 1, 1, 16, 16>}, {transform_indices = @transform_1, window_bounds = array<i64: 1, 1, 16, 16>}, {pipeline_mode = #tpu.pipeline_mode<synchronous>, transform_indices = @transform_2, window_bounds = array<i64: 16, 8>}, {pipeline_mode = #tpu.pipeline_mode<synchronous>, transform_indices = @transform_3, window_bounds = array<i64: 8, 16>}, {pipeline_mode = #tpu.pipeline_mode<synchronous>, transform_indices = @transform_4, window_bounds = array<i64: 16, 8>}, {pipeline_mode = #tpu.pipeline_mode<synchronous>, transform_indices = @transform_5, window_bounds = array<i64: 8, 4>}, {pipeline_mode = #tpu.pipeline_mode<synchronous>, transform_indices = @transform_6, window_bounds = array<i64: 4, 8>}, {pipeline_mode = #tpu.pipeline_mode<synchronous>, transform_indices = @transform_7, window_bounds = array<i64: 16, 4>}, {pipeline_mode = #tpu.pipeline_mode<synchronous>, transform_indices = @transform_8, window_bounds = array<i64: 4, 2>}, {pipeline_mode = #tpu.pipeline_mode<synchronous>, transform_indices = @transform_9, window_bounds = array<i64: 2, 4>}, {pipeline_mode = #tpu.pipeline_mode<synchronous>, transform_indices = @transform_10, window_bounds = array<i64: 16, 2>}, {transform_indices = @transform_11, window_bounds = array<i64: 1, 1, 12>}]} {
    %c0 = arith.constant 0 : index
    %c0_0 = arith.constant 0 : index
    %c0_1 = arith.constant 0 : index
    %c0_2 = arith.constant 0 : index
    %0 = vector.load %arg1[%c0, %c0_0, %c0_1, %c0_2] : memref<1x1x16x16xf32, #tpu.memory_space<vmem>>, vector<1x1x16x16xf32>
    %1 = vector.shape_cast %0 : vector<1x1x16x16xf32> to vector<16x16xf32>
    %c0_3 = arith.constant 0 : index
    %c0_4 = arith.constant 0 : index
    %c0_5 = arith.constant 0 : index
    %c0_6 = arith.constant 0 : index
    %2 = vector.load %arg2[%c0_3, %c0_4, %c0_5, %c0_6] : memref<1x1x16x16xf32, #tpu.memory_space<vmem>>, vector<1x1x16x16xf32>
    %3 = vector.shape_cast %2 : vector<1x1x16x16xf32> to vector<16x16xf32>
    %cst = arith.constant 0.000000e+00 : f32
    %4 = vector.broadcast %cst : f32 to vector<16x16xf32>
    %5 = arith.cmpf ogt, %3, %4 : vector<16x16xf32>
    %6 = arith.extui %5 : vector<16x16xi1> to vector<16x16xi32>
    %7 = arith.sitofp %6 : vector<16x16xi32> to vector<16x16xf32>
    %c0_7 = arith.constant 0 : index
    %c0_8 = arith.constant 0 : index
    %8 = vector.load %arg13[%c0_7, %c0_8] : memref<16x16xf32, #tpu.memory_space<vmem>>, vector<16x16xf32>
    tpu.vector_store %arg13[%c0_7, %c0_8], %7 {strides = array<i32>} : memref<16x16xf32, #tpu.memory_space<vmem>>, vector<16x16xf32>,
    %9 = arith.mulf %1, %7 : vector<16x16xf32>
    %10 = arith.mulf %3, %7 : vector<16x16xf32>
    %cst_9 = arith.constant 9.99999997E-7 : f32
    %11 = vector.broadcast %cst_9 : f32 to vector<16x16xf32>
    %12 = arith.addf %9, %11 : vector<16x16xf32>
    %cst_10 = arith.constant 9.99999997E-7 : f32
    %13 = vector.broadcast %cst_10 : f32 to vector<16x16xf32>
    %14 = arith.addf %10, %13 : vector<16x16xf32>
    %15 = tpu.reciprocal %14 {approx = true} : vector<16x16xf32> -> vector<16x16xf32>
    %16 = arith.mulf %12, %15 : vector<16x16xf32>
    %17 = math.log %16 : vector<16x16xf32>
    %18 = arith.mulf %17, %7 : vector<16x16xf32>
    %19 = vector.shape_cast %7 : vector<16x16xf32> to vector<1x16x16xf32>
    %cst_11 = arith.constant dense<0.000000e+00> : vector<1xf32>
    %20 = vector.multi_reduction <add>, %19, %cst_11 [1, 2] : vector<1x16x16xf32> to vector<1xf32>
    %21 = vector.shape_cast %20 : vector<1xf32> to vector<1x1x1xf32>
    %22 = vector.extract %21[0, 0, 0] : f32 from vector<1x1x1xf32>
    %23 = vector.shape_cast %18 : vector<16x16xf32> to vector<1x16x16xf32>
    %cst_12 = arith.constant dense<0.000000e+00> : vector<1xf32>
    %24 = vector.multi_reduction <add>, %23, %cst_12 [1, 2] : vector<1x16x16xf32> to vector<1xf32>
    %25 = vector.shape_cast %24 : vector<1xf32> to vector<1x1x1xf32>
    %26 = vector.extract %25[0, 0, 0] : f32 from vector<1x1x1xf32>
    %27 = arith.mulf %18, %18 : vector<16x16xf32>
    %28 = vector.shape_cast %27 : vector<16x16xf32> to vector<1x16x16xf32>
    %cst_13 = arith.constant dense<0.000000e+00> : vector<1xf32>
    %29 = vector.multi_reduction <add>, %28, %cst_13 [1, 2] : vector<1x16x16xf32> to vector<1xf32>
    %30 = vector.shape_cast %29 : vector<1xf32> to vector<1x1x1xf32>
    %31 = vector.extract %30[0, 0, 0] : f32 from vector<1x1x1xf32>
    %c0_14 = arith.constant 0 : index
    %c0_15 = arith.constant 0 : index
    %32 = vector.load %arg3[%c0_14, %c0_15] : memref<16x8xf32, #tpu.memory_space<vmem>>, vector<16x8xf32>
    %c0_16 = arith.constant 0 : index
    %c0_17 = arith.constant 0 : index
    %33 = vector.load %arg4[%c0_16, %c0_17] : memref<8x16xf32, #tpu.memory_space<vmem>>, vector<8x16xf32>
    %cst_18 = arith.constant dense<0.000000e+00> : vector<16x8xf32>
    %34 = tpu.matmul %1, %32, %cst_18 {dimension_numbers = #tpu.dot_dimension_numbers<[1], [0], [0], [1], [0, 0, 1, 1], [], []>} : vector<16x16xf32>, vector<16x8xf32>, vector<16x8xf32> -> vector<16x8xf32>
    %cst_19 = arith.constant dense<0.000000e+00> : vector<8x8xf32>
    %35 = tpu.matmul %33, %34, %cst_19 {dimension_numbers = #tpu.dot_dimension_numbers<[1], [0], [0], [1], [0, 0, 1, 1], [], []>} : vector<8x16xf32>, vector<16x8xf32>, vector<8x8xf32> -> vector<8x8xf32>
    %cst_20 = arith.constant dense<0.000000e+00> : vector<16x8xf32>
    %36 = tpu.matmul %3, %32, %cst_20 {dimension_numbers = #tpu.dot_dimension_numbers<[1], [0], [0], [1], [0, 0, 1, 1], [], []>} : vector<16x16xf32>, vector<16x8xf32>, vector<16x8xf32> -> vector<16x8xf32>
    %cst_21 = arith.constant dense<0.000000e+00> : vector<8x8xf32>
    %37 = tpu.matmul %33, %36, %cst_21 {dimension_numbers = #tpu.dot_dimension_numbers<[1], [0], [0], [1], [0, 0, 1, 1], [], []>} : vector<8x16xf32>, vector<16x8xf32>, vector<8x8xf32> -> vector<8x8xf32>
    %c0_22 = arith.constant 0 : index
    %c0_23 = arith.constant 0 : index
    %38 = vector.load %arg5[%c0_22, %c0_23] : memref<16x8xf32, #tpu.memory_space<vmem>>, vector<16x8xf32>
    %c0_24 = arith.constant 0 : index
    %c0_25 = arith.constant 0 : index
    %39 = tpu.strided_load %arg13[%c0_24, %c0_25] {strides = array<i32: 2, 1>} : memref<16x16xf32, #tpu.memory_space<vmem>>, vector<8x16xf32>
    %cst_26 = arith.constant dense<0.000000e+00> : vector<8x8xf32>
    %40 = tpu.matmul %39, %38, %cst_26 {dimension_numbers = #tpu.dot_dimension_numbers<[1], [0], [0], [1], [0, 0, 1, 1], [], []>} : vector<8x16xf32>, vector<16x8xf32>, vector<8x8xf32> -> vector<8x8xf32>
    %41 = arith.mulf %35, %40 : vector<8x8xf32>
    %42 = arith.mulf %37, %40 : vector<8x8xf32>
    %cst_27 = arith.constant 9.99999997E-7 : f32
    %43 = vector.broadcast %cst_27 : f32 to vector<8x8xf32>
    %44 = arith.addf %41, %43 : vector<8x8xf32>
    %cst_28 = arith.constant 9.99999997E-7 : f32
    %45 = vector.broadcast %cst_28 : f32 to vector<8x8xf32>
    %46 = arith.addf %42, %45 : vector<8x8xf32>
    %47 = tpu.reciprocal %46 {approx = true} : vector<8x8xf32> -> vector<8x8xf32>
    %48 = arith.mulf %44, %47 : vector<8x8xf32>
    %49 = math.log %48 : vector<8x8xf32>
    %50 = arith.mulf %49, %40 : vector<8x8xf32>
    %51 = vector.shape_cast %40 : vector<8x8xf32> to vector<1x8x8xf32>
    %cst_29 = arith.constant dense<0.000000e+00> : vector<1xf32>
    %52 = vector.multi_reduction <add>, %51, %cst_29 [1, 2] : vector<1x8x8xf32> to vector<1xf32>
    %53 = vector.shape_cast %52 : vector<1xf32> to vector<1x1x1xf32>
    %54 = vector.extract %53[0, 0, 0] : f32 from vector<1x1x1xf32>
    %55 = vector.shape_cast %50 : vector<8x8xf32> to vector<1x8x8xf32>
    %cst_30 = arith.constant dense<0.000000e+00> : vector<1xf32>
    %56 = vector.multi_reduction <add>, %55, %cst_30 [1, 2] : vector<1x8x8xf32> to vector<1xf32>
    %57 = vector.shape_cast %56 : vector<1xf32> to vector<1x1x1xf32>
    %58 = vector.extract %57[0, 0, 0] : f32 from vector<1x1x1xf32>
    %59 = arith.mulf %50, %50 : vector<8x8xf32>
    %60 = vector.shape_cast %59 : vector<8x8xf32> to vector<1x8x8xf32>
    %cst_31 = arith.constant dense<0.000000e+00> : vector<1xf32>
    %61 = vector.multi_reduction <add>, %60, %cst_31 [1, 2] : vector<1x8x8xf32> to vector<1xf32>
    %62 = vector.shape_cast %61 : vector<1xf32> to vector<1x1x1xf32>
    %63 = vector.extract %62[0, 0, 0] : f32 from vector<1x1x1xf32>
    %c0_32 = arith.constant 0 : index
    %c0_33 = arith.constant 0 : index
    %64 = vector.load %arg6[%c0_32, %c0_33] : memref<8x4xf32, #tpu.memory_space<vmem>>, vector<8x4xf32>
    %c0_34 = arith.constant 0 : index
    %c0_35 = arith.constant 0 : index
    %65 = vector.load %arg7[%c0_34, %c0_35] : memref<4x8xf32, #tpu.memory_space<vmem>>, vector<4x8xf32>
    %cst_36 = arith.constant dense<0.000000e+00> : vector<8x4xf32>
    %66 = tpu.matmul %35, %64, %cst_36 {dimension_numbers = #tpu.dot_dimension_numbers<[1], [0], [0], [1], [0, 0, 1, 1], [], []>} : vector<8x8xf32>, vector<8x4xf32>, vector<8x4xf32> -> vector<8x4xf32>
    %cst_37 = arith.constant dense<0.000000e+00> : vector<4x4xf32>
    %67 = tpu.matmul %65, %66, %cst_37 {dimension_numbers = #tpu.dot_dimension_numbers<[1], [0], [0], [1], [0, 0, 1, 1], [], []>} : vector<4x8xf32>, vector<8x4xf32>, vector<4x4xf32> -> vector<4x4xf32>
    %cst_38 = arith.constant dense<0.000000e+00> : vector<8x4xf32>
    %68 = tpu.matmul %37, %64, %cst_38 {dimension_numbers = #tpu.dot_dimension_numbers<[1], [0], [0], [1], [0, 0, 1, 1], [], []>} : vector<8x8xf32>, vector<8x4xf32>, vector<8x4xf32> -> vector<8x4xf32>
    %cst_39 = arith.constant dense<0.000000e+00> : vector<4x4xf32>
    %69 = tpu.matmul %65, %68, %cst_39 {dimension_numbers = #tpu.dot_dimension_numbers<[1], [0], [0], [1], [0, 0, 1, 1], [], []>} : vector<4x8xf32>, vector<8x4xf32>, vector<4x4xf32> -> vector<4x4xf32>
    %c0_40 = arith.constant 0 : index
    %c0_41 = arith.constant 0 : index
    %70 = vector.load %arg8[%c0_40, %c0_41] : memref<16x4xf32, #tpu.memory_space<vmem>>, vector<16x4xf32>
    %c0_42 = arith.constant 0 : index
    %c0_43 = arith.constant 0 : index
    %71 = tpu.strided_load %arg13[%c0_42, %c0_43] {strides = array<i32: 4, 1>} : memref<16x16xf32, #tpu.memory_space<vmem>>, vector<4x16xf32>
    %cst_44 = arith.constant dense<0.000000e+00> : vector<4x4xf32>
    %72 = tpu.matmul %71, %70, %cst_44 {dimension_numbers = #tpu.dot_dimension_numbers<[1], [0], [0], [1], [0, 0, 1, 1], [], []>} : vector<4x16xf32>, vector<16x4xf32>, vector<4x4xf32> -> vector<4x4xf32>
    %73 = arith.mulf %67, %72 : vector<4x4xf32>
    %74 = arith.mulf %69, %72 : vector<4x4xf32>
    %cst_45 = arith.constant 9.99999997E-7 : f32
    %75 = vector.broadcast %cst_45 : f32 to vector<4x4xf32>
    %76 = arith.addf %73, %75 : vector<4x4xf32>
    %cst_46 = arith.constant 9.99999997E-7 : f32
    %77 = vector.broadcast %cst_46 : f32 to vector<4x4xf32>
    %78 = arith.addf %74, %77 : vector<4x4xf32>
    %79 = tpu.reciprocal %78 {approx = true} : vector<4x4xf32> -> vector<4x4xf32>
    %80 = arith.mulf %76, %79 : vector<4x4xf32>
    %81 = math.log %80 : vector<4x4xf32>
    %82 = arith.mulf %81, %72 : vector<4x4xf32>
    %83 = vector.shape_cast %72 : vector<4x4xf32> to vector<1x4x4xf32>
    %cst_47 = arith.constant dense<0.000000e+00> : vector<1xf32>
    %84 = vector.multi_reduction <add>, %83, %cst_47 [1, 2] : vector<1x4x4xf32> to vector<1xf32>
    %85 = vector.shape_cast %84 : vector<1xf32> to vector<1x1x1xf32>
    %86 = vector.extract %85[0, 0, 0] : f32 from vector<1x1x1xf32>
    %87 = vector.shape_cast %82 : vector<4x4xf32> to vector<1x4x4xf32>
    %cst_48 = arith.constant dense<0.000000e+00> : vector<1xf32>
    %88 = vector.multi_reduction <add>, %87, %cst_48 [1, 2] : vector<1x4x4xf32> to vector<1xf32>
    %89 = vector.shape_cast %88 : vector<1xf32> to vector<1x1x1xf32>
    %90 = vector.extract %89[0, 0, 0] : f32 from vector<1x1x1xf32>
    %91 = arith.mulf %82, %82 : vector<4x4xf32>
    %92 = vector.shape_cast %91 : vector<4x4xf32> to vector<1x4x4xf32>
    %cst_49 = arith.constant dense<0.000000e+00> : vector<1xf32>
    %93 = vector.multi_reduction <add>, %92, %cst_49 [1, 2] : vector<1x4x4xf32> to vector<1xf32>
    %94 = vector.shape_cast %93 : vector<1xf32> to vector<1x1x1xf32>
    %95 = vector.extract %94[0, 0, 0] : f32 from vector<1x1x1xf32>
    %c0_50 = arith.constant 0 : index
    %c0_51 = arith.constant 0 : index
    %96 = vector.load %arg9[%c0_50, %c0_51] : memref<4x2xf32, #tpu.memory_space<vmem>>, vector<4x2xf32>
    %c0_52 = arith.constant 0 : index
    %c0_53 = arith.constant 0 : index
    %97 = vector.load %arg10[%c0_52, %c0_53] : memref<2x4xf32, #tpu.memory_space<vmem>>, vector<2x4xf32>
    %cst_54 = arith.constant dense<0.000000e+00> : vector<4x2xf32>
    %98 = tpu.matmul %67, %96, %cst_54 {dimension_numbers = #tpu.dot_dimension_numbers<[1], [0], [0], [1], [0, 0, 1, 1], [], []>} : vector<4x4xf32>, vector<4x2xf32>, vector<4x2xf32> -> vector<4x2xf32>
    %cst_55 = arith.constant dense<0.000000e+00> : vector<2x2xf32>
    %99 = tpu.matmul %97, %98, %cst_55 {dimension_numbers = #tpu.dot_dimension_numbers<[1], [0], [0], [1], [0, 0, 1, 1], [], []>} : vector<2x4xf32>, vector<4x2xf32>, vector<2x2xf32> -> vector<2x2xf32>
    %cst_56 = arith.constant dense<0.000000e+00> : vector<4x2xf32>
    %100 = tpu.matmul %69, %96, %cst_56 {dimension_numbers = #tpu.dot_dimension_numbers<[1], [0], [0], [1], [0, 0, 1, 1], [], []>} : vector<4x4xf32>, vector<4x2xf32>, vector<4x2xf32> -> vector<4x2xf32>
    %cst_57 = arith.constant dense<0.000000e+00> : vector<2x2xf32>
    %101 = tpu.matmul %97, %100, %cst_57 {dimension_numbers = #tpu.dot_dimension_numbers<[1], [0], [0], [1], [0, 0, 1, 1], [], []>} : vector<2x4xf32>, vector<4x2xf32>, vector<2x2xf32> -> vector<2x2xf32>
    %c0_58 = arith.constant 0 : index
    %c0_59 = arith.constant 0 : index
    %102 = vector.load %arg11[%c0_58, %c0_59] : memref<16x2xf32, #tpu.memory_space<vmem>>, vector<16x2xf32>
    %c0_60 = arith.constant 0 : index
    %c0_61 = arith.constant 0 : index
    %103 = tpu.strided_load %arg13[%c0_60, %c0_61] {strides = array<i32: 8, 1>} : memref<16x16xf32, #tpu.memory_space<vmem>>, vector<2x16xf32>
    %cst_62 = arith.constant dense<0.000000e+00> : vector<2x2xf32>
    %104 = tpu.matmul %103, %102, %cst_62 {dimension_numbers = #tpu.dot_dimension_numbers<[1], [0], [0], [1], [0, 0, 1, 1], [], []>} : vector<2x16xf32>, vector<16x2xf32>, vector<2x2xf32> -> vector<2x2xf32>
    %105 = arith.mulf %99, %104 : vector<2x2xf32>
    %106 = arith.mulf %101, %104 : vector<2x2xf32>
    %cst_63 = arith.constant 9.99999997E-7 : f32
    %107 = vector.broadcast %cst_63 : f32 to vector<2x2xf32>
    %108 = arith.addf %105, %107 : vector<2x2xf32>
    %cst_64 = arith.constant 9.99999997E-7 : f32
    %109 = vector.broadcast %cst_64 : f32 to vector<2x2xf32>
    %110 = arith.addf %106, %109 : vector<2x2xf32>
    %111 = tpu.reciprocal %110 {approx = true} : vector<2x2xf32> -> vector<2x2xf32>
    %112 = arith.mulf %108, %111 : vector<2x2xf32>
    %113 = math.log %112 : vector<2x2xf32>
    %114 = arith.mulf %113, %104 : vector<2x2xf32>
    %115 = vector.shape_cast %104 : vector<2x2xf32> to vector<1x2x2xf32>
    %cst_65 = arith.constant dense<0.000000e+00> : vector<1xf32>
    %116 = vector.multi_reduction <add>, %115, %cst_65 [1, 2] : vector<1x2x2xf32> to vector<1xf32>
    %117 = vector.shape_cast %116 : vector<1xf32> to vector<1x1x1xf32>
    %118 = vector.extract %117[0, 0, 0] : f32 from vector<1x1x1xf32>
    %119 = vector.shape_cast %114 : vector<2x2xf32> to vector<1x2x2xf32>
    %cst_66 = arith.constant dense<0.000000e+00> : vector<1xf32>
    %120 = vector.multi_reduction <add>, %119, %cst_66 [1, 2] : vector<1x2x2xf32> to vector<1xf32>
    %121 = vector.shape_cast %120 : vector<1xf32> to vector<1x1x1xf32>
    %122 = vector.extract %121[0, 0, 0] : f32 from vector<1x1x1xf32>
    %123 = arith.mulf %114, %114 : vector<2x2xf32>
    %124 = vector.shape_cast %123 : vector<2x2xf32> to vector<1x2x2xf32>
    %cst_67 = arith.constant dense<0.000000e+00> : vector<1xf32>
    %125 = vector.multi_reduction <add>, %124, %cst_67 [1, 2] : vector<1x2x2xf32> to vector<1xf32>
    %126 = vector.shape_cast %125 : vector<1xf32> to vector<1x1x1xf32>
    %127 = vector.extract %126[0, 0, 0] : f32 from vector<1x1x1xf32>
    %128 = tpu.iota {dimensions = array<i32: 2>} : vector<1x1x12xi32>
    %cst_68 = arith.constant 0.000000e+00 : f32
    %129 = vector.broadcast %cst_68 : f32 to vector<1x1x12xf32>
    %c0_i32 = arith.constant 0 : i32
    %130 = vector.broadcast %c0_i32 : i32 to vector<1x1x12xi32>
    %131 = arith.cmpi eq, %128, %130 : vector<1x1x12xi32>
    %132 = vector.broadcast %22 : f32 to vector<1x1x12xf32>
    %133 = arith.select %131, %132, %129 : vector<1x1x12xi1>, vector<1x1x12xf32>
    %c1_i32 = arith.constant 1 : i32
    %134 = vector.broadcast %c1_i32 : i32 to vector<1x1x12xi32>
    %135 = arith.cmpi eq, %128, %134 : vector<1x1x12xi32>
    %136 = vector.broadcast %26 : f32 to vector<1x1x12xf32>
    %137 = arith.select %135, %136, %133 : vector<1x1x12xi1>, vector<1x1x12xf32>
    %c2_i32 = arith.constant 2 : i32
    %138 = vector.broadcast %c2_i32 : i32 to vector<1x1x12xi32>
    %139 = arith.cmpi eq, %128, %138 : vector<1x1x12xi32>
    %140 = vector.broadcast %31 : f32 to vector<1x1x12xf32>
    %141 = arith.select %139, %140, %137 : vector<1x1x12xi1>, vector<1x1x12xf32>
    %c3_i32 = arith.constant 3 : i32
    %142 = vector.broadcast %c3_i32 : i32 to vector<1x1x12xi32>
    %143 = arith.cmpi eq, %128, %142 : vector<1x1x12xi32>
    %144 = vector.broadcast %54 : f32 to vector<1x1x12xf32>
    %145 = arith.select %143, %144, %141 : vector<1x1x12xi1>, vector<1x1x12xf32>
    %c4_i32 = arith.constant 4 : i32
    %146 = vector.broadcast %c4_i32 : i32 to vector<1x1x12xi32>
    %147 = arith.cmpi eq, %128, %146 : vector<1x1x12xi32>
    %148 = vector.broadcast %58 : f32 to vector<1x1x12xf32>
    %149 = arith.select %147, %148, %145 : vector<1x1x12xi1>, vector<1x1x12xf32>
    %c5_i32 = arith.constant 5 : i32
    %150 = vector.broadcast %c5_i32 : i32 to vector<1x1x12xi32>
    %151 = arith.cmpi eq, %128, %150 : vector<1x1x12xi32>
    %152 = vector.broadcast %63 : f32 to vector<1x1x12xf32>
    %153 = arith.select %151, %152, %149 : vector<1x1x12xi1>, vector<1x1x12xf32>
    %c6_i32 = arith.constant 6 : i32
    %154 = vector.broadcast %c6_i32 : i32 to vector<1x1x12xi32>
    %155 = arith.cmpi eq, %128, %154 : vector<1x1x12xi32>
    %156 = vector.broadcast %86 : f32 to vector<1x1x12xf32>
    %157 = arith.select %155, %156, %153 : vector<1x1x12xi1>, vector<1x1x12xf32>
    %c7_i32 = arith.constant 7 : i32
    %158 = vector.broadcast %c7_i32 : i32 to vector<1x1x12xi32>
    %159 = arith.cmpi eq, %128, %158 : vector<1x1x12xi32>
    %160 = vector.broadcast %90 : f32 to vector<1x1x12xf32>
    %161 = arith.select %159, %160, %157 : vector<1x1x12xi1>, vector<1x1x12xf32>
    %c8_i32 = arith.constant 8 : i32
    %162 = vector.broadcast %c8_i32 : i32 to vector<1x1x12xi32>
    %163 = arith.cmpi eq, %128, %162 : vector<1x1x12xi32>
    %164 = vector.broadcast %95 : f32 to vector<1x1x12xf32>
    %165 = arith.select %163, %164, %161 : vector<1x1x12xi1>, vector<1x1x12xf32>
    %c9_i32 = arith.constant 9 : i32
    %166 = vector.broadcast %c9_i32 : i32 to vector<1x1x12xi32>
    %167 = arith.cmpi eq, %128, %166 : vector<1x1x12xi32>
    %168 = vector.broadcast %118 : f32 to vector<1x1x12xf32>
    %169 = arith.select %167, %168, %165 : vector<1x1x12xi1>, vector<1x1x12xf32>
    %c10_i32 = arith.constant 10 : i32
    %170 = vector.broadcast %c10_i32 : i32 to vector<1x1x12xi32>
    %171 = arith.cmpi eq, %128, %170 : vector<1x1x12xi32>
    %172 = vector.broadcast %122 : f32 to vector<1x1x12xf32>
    %173 = arith.select %171, %172, %169 : vector<1x1x12xi1>, vector<1x1x12xf32>
    %c11_i32 = arith.constant 11 : i32
    %174 = vector.broadcast %c11_i32 : i32 to vector<1x1x12xi32>
    %175 = arith.cmpi eq, %128, %174 : vector<1x1x12xi32>
    %176 = vector.broadcast %127 : f32 to vector<1x1x12xf32>
    %177 = arith.select %175, %176, %173 : vector<1x1x12xi1>, vector<1x1x12xf32>
    %c0_69 = arith.constant 0 : index
    %c0_70 = arith.constant 0 : index
    %c0_71 = arith.constant 0 : index
    %178 = vector.load %arg12[%c0_69, %c0_70, %c0_71] : memref<1x1x12xf32, #tpu.memory_space<vmem>>, vector<1x1x12xf32>
    tpu.vector_store %arg12[%c0_69, %c0_70, %c0_71], %177 {strides = array<i32>} : memref<1x1x12xf32, #tpu.memory_space<vmem>>, vector<1x1x12xf32>,
    return
  }
  func.func @transform_0(%arg0: i32) -> (i32, i32, i32, i32) {
    %c0_i32 = arith.constant 0 : i32
    %c0_i32_0 = arith.constant 0 : i32
    %c0_i32_1 = arith.constant 0 : i32
    %c0_i32_2 = arith.constant 0 : i32
    return %arg0, %c0_i32, %c0_i32_0, %c0_i32_1 : i32, i32, i32, i32
  }
  func.func @transform_1(%arg0: i32) -> (i32, i32, i32, i32) {
    %c0_i32 = arith.constant 0 : i32
    %c0_i32_0 = arith.constant 0 : i32
    %c0_i32_1 = arith.constant 0 : i32
    %c0_i32_2 = arith.constant 0 : i32
    return %arg0, %c0_i32, %c0_i32_0, %c0_i32_1 : i32, i32, i32, i32
  }
  func.func @transform_2(%arg0: i32) -> (i32, i32) {
    %c0_i32 = arith.constant 0 : i32
    %c0_i32_0 = arith.constant 0 : i32
    %c0_i32_1 = arith.constant 0 : i32
    return %c0_i32, %c0_i32_0 : i32, i32
  }
  func.func @transform_3(%arg0: i32) -> (i32, i32) {
    %c0_i32 = arith.constant 0 : i32
    %c0_i32_0 = arith.constant 0 : i32
    %c0_i32_1 = arith.constant 0 : i32
    return %c0_i32, %c0_i32_0 : i32, i32
  }
  func.func @transform_4(%arg0: i32) -> (i32, i32) {
    %c0_i32 = arith.constant 0 : i32
    %c0_i32_0 = arith.constant 0 : i32
    %c0_i32_1 = arith.constant 0 : i32
    return %c0_i32, %c0_i32_0 : i32, i32
  }
  func.func @transform_5(%arg0: i32) -> (i32, i32) {
    %c0_i32 = arith.constant 0 : i32
    %c0_i32_0 = arith.constant 0 : i32
    %c0_i32_1 = arith.constant 0 : i32
    return %c0_i32, %c0_i32_0 : i32, i32
  }
  func.func @transform_6(%arg0: i32) -> (i32, i32) {
    %c0_i32 = arith.constant 0 : i32
    %c0_i32_0 = arith.constant 0 : i32
    %c0_i32_1 = arith.constant 0 : i32
    return %c0_i32, %c0_i32_0 : i32, i32
  }
  func.func @transform_7(%arg0: i32) -> (i32, i32) {
    %c0_i32 = arith.constant 0 : i32
    %c0_i32_0 = arith.constant 0 : i32
    %c0_i32_1 = arith.constant 0 : i32
    return %c0_i32, %c0_i32_0 : i32, i32
  }
  func.func @transform_8(%arg0: i32) -> (i32, i32) {
    %c0_i32 = arith.constant 0 : i32
    %c0_i32_0 = arith.constant 0 : i32
    %c0_i32_1 = arith.constant 0 : i32
    return %c0_i32, %c0_i32_0 : i32, i32
  }
  func.func @transform_9(%arg0: i32) -> (i32, i32) {
    %c0_i32 = arith.constant 0 : i32
    %c0_i32_0 = arith.constant 0 : i32
    %c0_i32_1 = arith.constant 0 : i32
    return %c0_i32, %c0_i32_0 : i32, i32
  }
  func.func @transform_10(%arg0: i32) -> (i32, i32) {
    %c0_i32 = arith.constant 0 : i32
    %c0_i32_0 = arith.constant 0 : i32
    %c0_i32_1 = arith.constant 0 : i32
    return %c0_i32, %c0_i32_0 : i32, i32
  }
  func.func @transform_11(%arg0: i32) -> (i32, i32, i32) {
    %c0_i32 = arith.constant 0 : i32
    %c0_i32_0 = arith.constant 0 : i32
    %c0_i32_1 = arith.constant 0 : i32
    return %arg0, %c0_i32, %c0_i32_0 : i32, i32, i32
  }
}

</mosaic_0001>

<llo_original>
// kernel: tpu_custom_call.1
$region0: #{tpu_custom_call.1}
  #allocation0 [shape = 'u32[]', space=smem, size = 0x4, offset = 0x4, fixed_abs, tag = 'smem constant byte address 0x4 - core index']
  #allocation1 [shape = 'u32[72,128]{1,0:T(1,128)}', space=vmem, size = 0x9000, scoped, tag = 'internal scratch']
  #allocation2 [shape = 'f32[16,16]{1,0:T(8,128)}', space=vmem, size = 0x2000, scoped, tag = 'scratch operand']
  %s0 = inlined_call_operand.vmem [shape: f32[2,1,16,16], index: 0, kind: input, shape index: {}]
  %s1 = inlined_call_operand.vmem [shape: f32[2,1,16,16], index: 1, kind: input, shape index: {}]
  %s2 = inlined_call_operand.vmem [shape: f32[16,8], index: 2, kind: input, shape index: {}]
  %s3 = inlined_call_operand.vmem [shape: f32[8,16], index: 3, kind: input, shape index: {}]
  %s4 = inlined_call_operand.vmem [shape: f32[16,8], index: 4, kind: input, shape index: {}]
  %s5 = inlined_call_operand.vmem [shape: f32[8,4], index: 5, kind: input, shape index: {}]
  %s6 = inlined_call_operand.vmem [shape: f32[4,8], index: 6, kind: input, shape index: {}]
  %s7 = inlined_call_operand.vmem [shape: f32[16,4], index: 7, kind: input, shape index: {}]
  %s8 = inlined_call_operand.vmem [shape: f32[4,2], index: 8, kind: input, shape index: {}]
  %s9 = inlined_call_operand.vmem [shape: f32[2,4], index: 9, kind: input, shape index: {}]
  %s10 = inlined_call_operand.vmem [shape: f32[16,2], index: 10, kind: input, shape index: {}]
  %s11 = inlined_call_operand.hbm [shape: f32[2,1,12], index: 11, kind: output, shape index: {}]
  %s12 = sld [smem:[#allocation0]]
  $region77: #{tpu_custom_call.1} parent=0
    _
  %s14 = ssub.s32 1, %s12
  %s15 = scalar_select 0, %s14, %s12
  $region1: #{tpu_custom_call.1} parent=0
    #allocation3 [shape = 'u8[1024]{0}', space=vmem, size = 0x400, scoped, tag = 'output window, operand 0']
    #allocation4 [shape = 's32[2]{0}', space=sflag, size = 0x8, scoped, tag = 'scoped memory for tpu_custom_call.1']
    %16 = vsyncpa [#allocation4], 0
    %s17 = scalar_lea.sflag [#allocation4], 1
    %18 = vsyncpa %s17, 0
    loop: start=0, step=1, limit=4
    $region2: #{tpu_custom_call.1} parent=1 // loop_pre_header
      _
    $region3: #{tpu_custom_call.1} parent=1 // loop_header
      %s20 = sphi 0, %s24
      %p21 = scmp.ge.s32.totalorder %s20, 4
      %s30 = sphi 0, %s32
      %s33 = sphi 0, %s30
      %s34 = sphi 0, %s33
      %s50 = sphi 0, %s34
      %s56 = sphi 0, %s58
      %s59 = sphi 0, %s56
      %s60 = sphi 0, %s59
      %s76 = sphi 0, %s60
      %s80 = sphi 0, %s80
      %s82 = sphi 0, %s80
      %s83 = sphi 0, %s82
      %s97 = sphi 0, %s83
      %s101 = sphi 0, %s101
      %s103 = sphi 0, %s101
      %s104 = sphi 0, %s103
      %s118 = sphi 0, %s104
      %s122 = sphi 0, %s122
      %s124 = sphi 0, %s122
      %s125 = sphi 0, %s124
      %s139 = sphi 0, %s125
      %s143 = sphi 0, %s143
      %s145 = sphi 0, %s143
      %s146 = sphi 0, %s145
      %s160 = sphi 0, %s146
      %s164 = sphi 0, %s164
      %s166 = sphi 0, %s164
      %s167 = sphi 0, %s166
      %s181 = sphi 0, %s167
      %s185 = sphi 0, %s185
      %s187 = sphi 0, %s185
      %s188 = sphi 0, %s187
      %s202 = sphi 0, %s188
      %s206 = sphi 0, %s206
      %s208 = sphi 0, %s206
      %s209 = sphi 0, %s208
      %s223 = sphi 0, %s209
      %s227 = sphi 0, %s227
      %s229 = sphi 0, %s227
      %s230 = sphi 0, %s229
      %s244 = sphi 0, %s230
      %s248 = sphi 0, %s248
      %s250 = sphi 0, %s248
      %s251 = sphi 0, %s250
      %s265 = sphi 0, %s251
      %s271 = sphi 0, %s273
      %s274 = sphi 0, %s271
      %s275 = sphi 0, %s274
      %s291 = sphi 0, %s275
    $region4: #{tpu_custom_call.1} parent=1 // loop_header_branch
      %23 = sbr.rel (%p21) target = $region8
    $region5: #{tpu_custom_call.1} parent=1 // loop_body
      %s25 = ssub.s32 %s20, 1
      %s26 = ssub.s32 %s20, 2
      %s27 = sadd.s32 %s20, 1
      %s28 = ssub.s32 %s20, %s27
      %p29 = scmp.eq.s32.totalorder %s28, 0
      %s31 = sadd.s32 %s30, 1
      %s32 = scalar_select %p29, %s30, %s31
      %p35 = pneg %p29
      %p36 = scmp.eq.s32.totalorder %s20, 1
      %p37 = por %p35, %p36
      %p38 = scmp.ne.s32.totalorder %s30, %s33
      %p39 = scmp.eq.s32.totalorder %s20, 0
      %p40 = por %p38, %p39
      %p41 = scmp.ne.s32.totalorder %s30, %s33
      %p42 = scmp.eq.s32.totalorder %s25, 1
      %p43 = por %p41, %p42
      %p44 = scmp.ne.s32.totalorder %s33, %s34
      %p45 = scmp.eq.s32.totalorder %s25, 0
      %p46 = por %p44, %p45
      %p47 = scmp.ne.s32.totalorder %s33, %s34
      %p48 = scmp.eq.s32.totalorder %s26, 1
      %p49 = por %p47, %p48
      %p51 = scmp.ne.s32.totalorder %s34, %s50
      %p52 = scmp.eq.s32.totalorder %s26, 0
      %p53 = por %p51, %p52
      %s54 = ssub.s32 %s20, %s27
      %p55 = scmp.eq.s32.totalorder %s54, 0
      %s57 = sadd.s32 %s56, 1
      %s58 = scalar_select %p55, %s56, %s57
      %p61 = pneg %p55
      %p62 = scmp.eq.s32.totalorder %s20, 1
      %p63 = por %p61, %p62
      %p64 = scmp.ne.s32.totalorder %s56, %s59
      %p65 = scmp.eq.s32.totalorder %s20, 0
      %p66 = por %p64, %p65
      %p67 = scmp.ne.s32.totalorder %s56, %s59
      %p68 = scmp.eq.s32.totalorder %s25, 1
      %p69 = por %p67, %p68
      %p70 = scmp.ne.s32.totalorder %s59, %s60
      %p71 = scmp.eq.s32.totalorder %s25, 0
      %p72 = por %p70, %p71
      %p73 = scmp.ne.s32.totalorder %s59, %s60
      %p74 = scmp.eq.s32.totalorder %s26, 1
      %p75 = por %p73, %p74
      %p77 = scmp.ne.s32.totalorder %s60, %s76
      %p78 = scmp.eq.s32.totalorder %s26, 0
      %p79 = por %p77, %p78
      %s81 = sadd.s32 %s80, 1
      %p84 = scmp.eq.s32.totalorder %s20, 1
      %p85 = scmp.ne.s32.totalorder %s80, %s82
      %p86 = scmp.eq.s32.totalorder %s20, 0
      %p87 = por %p85, %p86
      %p88 = scmp.ne.s32.totalorder %s80, %s82
      %p89 = scmp.eq.s32.totalorder %s25, 1
      %p90 = por %p88, %p89
      %p91 = scmp.ne.s32.totalorder %s82, %s83
      %p92 = scmp.eq.s32.totalorder %s25, 0
      %p93 = por %p91, %p92
      %p94 = scmp.ne.s32.totalorder %s82, %s83
      %p95 = scmp.eq.s32.totalorder %s26, 1
      %p96 = por %p94, %p95
      %p98 = scmp.ne.s32.totalorder %s83, %s97
      %p99 = scmp.eq.s32.totalorder %s26, 0
      %p100 = por %p98, %p99
      %s102 = sadd.s32 %s101, 1
      %p105 = scmp.eq.s32.totalorder %s20, 1
      %p106 = scmp.ne.s32.totalorder %s101, %s103
      %p107 = scmp.eq.s32.totalorder %s20, 0
      %p108 = por %p106, %p107
      %p109 = scmp.ne.s32.totalorder %s101, %s103
      %p110 = scmp.eq.s32.totalorder %s25, 1
      %p111 = por %p109, %p110
      %p112 = scmp.ne.s32.totalorder %s103, %s104
      %p113 = scmp.eq.s32.totalorder %s25, 0
      %p114 = por %p112, %p113
      %p115 = scmp.ne.s32.totalorder %s103, %s104
      %p116 = scmp.eq.s32.totalorder %s26, 1
      %p117 = por %p115, %p116
      %p119 = scmp.ne.s32.totalorder %s104, %s118
      %p120 = scmp.eq.s32.totalorder %s26, 0
      %p121 = por %p119, %p120
      %s123 = sadd.s32 %s122, 1
      %p126 = scmp.eq.s32.totalorder %s20, 1
      %p127 = scmp.ne.s32.totalorder %s122, %s124
      %p128 = scmp.eq.s32.totalorder %s20, 0
      %p129 = por %p127, %p128
      %p130 = scmp.ne.s32.totalorder %s122, %s124
      %p131 = scmp.eq.s32.totalorder %s25, 1
      %p132 = por %p130, %p131
      %p133 = scmp.ne.s32.totalorder %s124, %s125
      %p134 = scmp.eq.s32.totalorder %s25, 0
      %p135 = por %p133, %p134
      %p136 = scmp.ne.s32.totalorder %s124, %s125
      %p137 = scmp.eq.s32.totalorder %s26, 1
      %p138 = por %p136, %p137
      %p140 = scmp.ne.s32.totalorder %s125, %s139
      %p141 = scmp.eq.s32.totalorder %s26, 0
      %p142 = por %p140, %p141
      %s144 = sadd.s32 %s143, 1
      %p147 = scmp.eq.s32.totalorder %s20, 1
      %p148 = scmp.ne.s32.totalorder %s143, %s145
      %p149 = scmp.eq.s32.totalorder %s20, 0
      %p150 = por %p148, %p149
      %p151 = scmp.ne.s32.totalorder %s143, %s145
      %p152 = scmp.eq.s32.totalorder %s25, 1
      %p153 = por %p151, %p152
      %p154 = scmp.ne.s32.totalorder %s145, %s146
      %p155 = scmp.eq.s32.totalorder %s25, 0
      %p156 = por %p154, %p155
      %p157 = scmp.ne.s32.totalorder %s145, %s146
      %p158 = scmp.eq.s32.totalorder %s26, 1
      %p159 = por %p157, %p158
      %p161 = scmp.ne.s32.totalorder %s146, %s160
      %p162 = scmp.eq.s32.totalorder %s26, 0
      %p163 = por %p161, %p162
      %s165 = sadd.s32 %s164, 1
      %p168 = scmp.eq.s32.totalorder %s20, 1
      %p169 = scmp.ne.s32.totalorder %s164, %s166
      %p170 = scmp.eq.s32.totalorder %s20, 0
      %p171 = por %p169, %p170
      %p172 = scmp.ne.s32.totalorder %s164, %s166
      %p173 = scmp.eq.s32.totalorder %s25, 1
      %p174 = por %p172, %p173
      %p175 = scmp.ne.s32.totalorder %s166, %s167
      %p176 = scmp.eq.s32.totalorder %s25, 0
      %p177 = por %p175, %p176
      %p178 = scmp.ne.s32.totalorder %s166, %s167
      %p179 = scmp.eq.s32.totalorder %s26, 1
      %p180 = por %p178, %p179
      %p182 = scmp.ne.s32.totalorder %s167, %s181
      %p183 = scmp.eq.s32.totalorder %s26, 0
      %p184 = por %p182, %p183
      %s186 = sadd.s32 %s185, 1
      %p189 = scmp.eq.s32.totalorder %s20, 1
      %p190 = scmp.ne.s32.totalorder %s185, %s187
      %p191 = scmp.eq.s32.totalorder %s20, 0
      %p192 = por %p190, %p191
      %p193 = scmp.ne.s32.totalorder %s185, %s187
      %p194 = scmp.eq.s32.totalorder %s25, 1
      %p195 = por %p193, %p194
      %p196 = scmp.ne.s32.totalorder %s187, %s188
      %p197 = scmp.eq.s32.totalorder %s25, 0
      %p198 = por %p196, %p197
      %p199 = scmp.ne.s32.totalorder %s187, %s188
      %p200 = scmp.eq.s32.totalorder %s26, 1
      %p201 = por %p199, %p200
      %p203 = scmp.ne.s32.totalorder %s188, %s202
      %p204 = scmp.eq.s32.totalorder %s26, 0
      %p205 = por %p203, %p204
      %s207 = sadd.s32 %s206, 1
      %p210 = scmp.eq.s32.totalorder %s20, 1
      %p211 = scmp.ne.s32.totalorder %s206, %s208
      %p212 = scmp.eq.s32.totalorder %s20, 0
      %p213 = por %p211, %p212
      %p214 = scmp.ne.s32.totalorder %s206, %s208
      %p215 = scmp.eq.s32.totalorder %s25, 1
      %p216 = por %p214, %p215
      %p217 = scmp.ne.s32.totalorder %s208, %s209
      %p218 = scmp.eq.s32.totalorder %s25, 0
      %p219 = por %p217, %p218
      %p220 = scmp.ne.s32.totalorder %s208, %s209
      %p221 = scmp.eq.s32.totalorder %s26, 1
      %p222 = por %p220, %p221
      %p224 = scmp.ne.s32.totalorder %s209, %s223
      %p225 = scmp.eq.s32.totalorder %s26, 0
      %p226 = por %p224, %p225
      %s228 = sadd.s32 %s227, 1
      %p231 = scmp.eq.s32.totalorder %s20, 1
      %p232 = scmp.ne.s32.totalorder %s227, %s229
      %p233 = scmp.eq.s32.totalorder %s20, 0
      %p234 = por %p232, %p233
      %p235 = scmp.ne.s32.totalorder %s227, %s229
      %p236 = scmp.eq.s32.totalorder %s25, 1
      %p237 = por %p235, %p236
      %p238 = scmp.ne.s32.totalorder %s229, %s230
      %p239 = scmp.eq.s32.totalorder %s25, 0
      %p240 = por %p238, %p239
      %p241 = scmp.ne.s32.totalorder %s229, %s230
      %p242 = scmp.eq.s32.totalorder %s26, 1
      %p243 = por %p241, %p242
      %p245 = scmp.ne.s32.totalorder %s230, %s244
      %p246 = scmp.eq.s32.totalorder %s26, 0
      %p247 = por %p245, %p246
      %s249 = sadd.s32 %s248, 1
      %p252 = scmp.eq.s32.totalorder %s20, 1
      %p253 = scmp.ne.s32.totalorder %s248, %s250
      %p254 = scmp.eq.s32.totalorder %s20, 0
      %p255 = por %p253, %p254
      %p256 = scmp.ne.s32.totalorder %s248, %s250
      %p257 = scmp.eq.s32.totalorder %s25, 1
      %p258 = por %p256, %p257
      %p259 = scmp.ne.s32.totalorder %s250, %s251
      %p260 = scmp.eq.s32.totalorder %s25, 0
      %p261 = por %p259, %p260
      %p262 = scmp.ne.s32.totalorder %s250, %s251
      %p263 = scmp.eq.s32.totalorder %s26, 1
      %p264 = por %p262, %p263
      %p266 = scmp.ne.s32.totalorder %s251, %s265
      %p267 = scmp.eq.s32.totalorder %s26, 0
      %p268 = por %p266, %p267
      %s269 = ssub.s32 %s20, %s27
      %p270 = scmp.eq.s32.totalorder %s269, 0
      %s272 = sadd.s32 %s271, 1
      %s273 = scalar_select %p270, %s271, %s272
      %p276 = pneg %p270
      %p277 = scmp.eq.s32.totalorder %s20, 1
      %p278 = por %p276, %p277
      %p279 = scmp.ne.s32.totalorder %s271, %s274
      %p280 = scmp.eq.s32.totalorder %s20, 0
      %p281 = por %p279, %p280
      %p282 = scmp.ne.s32.totalorder %s271, %s274
      %p283 = scmp.eq.s32.totalorder %s25, 1
      %p284 = por %p282, %p283
      %p285 = scmp.ne.s32.totalorder %s274, %s275
      %p286 = scmp.eq.s32.totalorder %s25, 0
      %p287 = por %p285, %p286
      %p288 = scmp.ne.s32.totalorder %s274, %s275
      %p289 = scmp.eq.s32.totalorder %s26, 1
      %p290 = por %p288, %p289
      %p292 = scmp.ne.s32.totalorder %s275, %s291
      %p293 = scmp.eq.s32.totalorder %s26, 0
      %p294 = por %p292, %p293
      %p295 = scmp.le.s32.totalorder 1, %s20
      %p296 = scmp.lt.s32.totalorder %s20, 3
      %p297 = pnand %p295, %p296
      %p298 = pneg %p297
      // Predicated region
      $region9: #{tpu_custom_call.1} parent=5 // pred_check
        _
      $region10: #{tpu_custom_call.1} parent=5 // pred_check_branch
        %300 = sbr.rel (%p297) target = $region12
      $region11: #{tpu_custom_call.1} parent=5 // pred_region
        %s301 = ssub.s32 %s20, 1
        // Predicated region
        $region13: #{tpu_custom_call.1} parent=11 // pred_check
          %p302 = pneg %p93
        $region14: #{tpu_custom_call.1} parent=11 // pred_check_branch
          %304 = sbr.rel (%p302) target = $region16
        $region15: #{tpu_custom_call.1} parent=11 // pred_region
          _
        $region16: #{tpu_custom_call.1} parent=11 // pred_fallthru
          _
        // Predicated region
        $region17: #{tpu_custom_call.1} parent=11 // pred_check
          %p305 = pneg %p114
        $region18: #{tpu_custom_call.1} parent=11 // pred_check_branch
          %307 = sbr.rel (%p305) target = $region20
        $region19: #{tpu_custom_call.1} parent=11 // pred_region
          _
        $region20: #{tpu_custom_call.1} parent=11 // pred_fallthru
          _
        // Predicated region
        $region21: #{tpu_custom_call.1} parent=11 // pred_check
          %p308 = pneg %p135
        $region22: #{tpu_custom_call.1} parent=11 // pred_check_branch
          %310 = sbr.rel (%p308) target = $region24
        $region23: #{tpu_custom_call.1} parent=11 // pred_region
          _
        $region24: #{tpu_custom_call.1} parent=11 // pred_fallthru
          _
        // Predicated region
        $region25: #{tpu_custom_call.1} parent=11 // pred_check
          %p311 = pneg %p156
        $region26: #{tpu_custom_call.1} parent=11 // pred_check_branch
          %313 = sbr.rel (%p311) target = $region28
        $region27: #{tpu_custom_call.1} parent=11 // pred_region
          _
        $region28: #{tpu_custom_call.1} parent=11 // pred_fallthru
          _
        // Predicated region
        $region29: #{tpu_custom_call.1} parent=11 // pred_check
          %p314 = pneg %p177
        $region30: #{tpu_custom_call.1} parent=11 // pred_check_branch
          %316 = sbr.rel (%p314) target = $region32
        $region31: #{tpu_custom_call.1} parent=11 // pred_region
          _
        $region32: #{tpu_custom_call.1} parent=11 // pred_fallthru
          _
        // Predicated region
        $region33: #{tpu_custom_call.1} parent=11 // pred_check
          %p317 = pneg %p198
        $region34: #{tpu_custom_call.1} parent=11 // pred_check_branch
          %319 = sbr.rel (%p317) target = $region36
        $region35: #{tpu_custom_call.1} parent=11 // pred_region
          _
        $region36: #{tpu_custom_call.1} parent=11 // pred_fallthru
          _
        // Predicated region
        $region37: #{tpu_custom_call.1} parent=11 // pred_check
          %p320 = pneg %p219
        $region38: #{tpu_custom_call.1} parent=11 // pred_check_branch
          %322 = sbr.rel (%p320) target = $region40
        $region39: #{tpu_custom_call.1} parent=11 // pred_region
          _
        $region40: #{tpu_custom_call.1} parent=11 // pred_fallthru
          _
        // Predicated region
        $region41: #{tpu_custom_call.1} parent=11 // pred_check
          %p323 = pneg %p240
        $region42: #{tpu_custom_call.1} parent=11 // pred_check_branch
          %325 = sbr.rel (%p323) target = $region44
        $region43: #{tpu_custom_call.1} parent=11 // pred_region
          _
        $region44: #{tpu_custom_call.1} parent=11 // pred_fallthru
          _
        // Predicated region
        $region45: #{tpu_custom_call.1} parent=11 // pred_check
          %p326 = pneg %p261
        $region46: #{tpu_custom_call.1} parent=11 // pred_check_branch
          %328 = sbr.rel (%p326) target = $region48
        $region47: #{tpu_custom_call.1} parent=11 // pred_region
          _
        $region48: #{tpu_custom_call.1} parent=11 // pred_fallthru
          _
      $region12: #{tpu_custom_call.1} parent=5 // pred_fallthru
        _
      %p329 = scmp.lt.s32.totalorder %s20, 2
      // Predicated region
      $region49: #{tpu_custom_call.1} parent=5 // pred_check
        %p330 = pneg %p329
      $region50: #{tpu_custom_call.1} parent=5 // pred_check_branch
        %332 = sbr.rel (%p330) target = $region52
      $region51: #{tpu_custom_call.1} parent=5 // pred_region
        // Predicated region
        $region53: #{tpu_custom_call.1} parent=51 // pred_check
          %p333 = pneg %p40
        $region54: #{tpu_custom_call.1} parent=51 // pred_check_branch
          %335 = sbr.rel (%p333) target = $region56
        $region55: #{tpu_custom_call.1} parent=51 // pred_region
          %p336 = scmp.lt.s32.totalorder %s20, 1
          %s337 = scalar_select %p336, %s20, 1
          %s338 = smul.addr %s337, 2
          %s339 = smul.addr %s338, 8
          %s340 = scalar_lea.vmem %s0, %s339
        $region56: #{tpu_custom_call.1} parent=51 // pred_fallthru
          _
        // Predicated region
        $region57: #{tpu_custom_call.1} parent=51 // pred_check
          %p341 = pneg %p66
        $region58: #{tpu_custom_call.1} parent=51 // pred_check_branch
          %343 = sbr.rel (%p341) target = $region60
        $region59: #{tpu_custom_call.1} parent=51 // pred_region
          %p344 = scmp.lt.s32.totalorder %s20, 1
          %s345 = scalar_select %p344, %s20, 1
          %s346 = smul.addr %s345, 2
          %s347 = smul.addr %s346, 8
          %s348 = scalar_lea.vmem %s1, %s347
        $region60: #{tpu_custom_call.1} parent=51 // pred_fallthru
          _
      $region52: #{tpu_custom_call.1} parent=5 // pred_fallthru
        _
      %p349 = scmp.le.s32.totalorder 1, %s20
      %p350 = scmp.lt.s32.totalorder %s20, 3
      %p351 = pnand %p349, %p350
      %p352 = pneg %p351
      // Predicated region
      $region61: #{tpu_custom_call.1} parent=5 // pred_check
        _
      $region62: #{tpu_custom_call.1} parent=5 // pred_check_branch
        %354 = sbr.rel (%p351) target = $region64
      $region63: #{tpu_custom_call.1} parent=5 // pred_region
        %s355 = ssub.s32 %s20, 1
        %p356 = scmp.lt.s32.totalorder %s25, 1
        %s357 = scalar_select %p356, %s25, 1
        %s358 = smul.addr %s357, 2
        %s359 = smul.addr %s358, 8
        %s360 = scalar_lea.vmem %s0, %s359
        %p361 = pneg %p46
        %p362 = pneg %p43
        %p363 = scmp.lt.s32.totalorder %s25, 1
        %s364 = scalar_select %p363, %s25, 1
        %s365 = smul.addr %s364, 2
        %s366 = smul.addr %s365, 8
        %s367 = scalar_lea.vmem %s1, %s366
        %p368 = pneg %p72
        %p369 = pneg %p69
        %p370 = pneg %p93
        %p371 = pneg %p90
        %p372 = pneg %p114
        %p373 = pneg %p111
        %p374 = pneg %p135
        %p375 = pneg %p132
        %p376 = pneg %p156
        %p377 = pneg %p153
        %p378 = pneg %p177
        %p379 = pneg %p174
        %p380 = pneg %p198
        %p381 = pneg %p195
        %p382 = pneg %p219
        %p383 = pneg %p216
        %p384 = pneg %p240
        %p385 = pneg %p237
        %p386 = pneg %p261
        %p387 = pneg %p258
        %p388 = pneg %p287
        %p389 = pneg %p284
        %s390 = sand.u32 %s274, 1
        %s391 = scalar_lea.sflag [#allocation4], %s390
        %s392 = sand.u32 %s274, 1
        %s393 = scalar_lea.vmem [#allocation3], %s392
        %p394 = scmp.lt.s32.totalorder %s25, 1
        %s395 = scalar_select %p394, %s25, 1
        %s396 = smul.addr %s395, 2
        %s397 = smul.addr %s396, 8
        %s398 = scalar_lea.vmem %s0, %s397
        %p399 = scmp.lt.s32.totalorder %s25, 1
        %s400 = scalar_select %p399, %s25, 1
        %s401 = smul.addr %s400, 2
        %s402 = smul.addr %s401, 8
        %s403 = scalar_lea.vmem %s1, %s402
        %v404 = vld [vmem:[%s398] sm:$0xff]
        %v405 = vld [vmem:[%s398 + $0x8] sm:$0xff]
        %v406 = vld [vmem:[%s403] sm:$0xff]
        %v407 = vld [vmem:[%s403 + $0x8] sm:$0xff]
        %vm408 = vcmp.gt.f32.partialorder %v406, 0.0
        %vm409 = vcmp.gt.f32.partialorder %v407, 0.0
        %v410 = vsel %vm408, 1, 0
        %v411 = vsel %vm409, 1, 0
        %v412 = vcvt.s32.f32 %v410
        %v413 = vcvt.s32.f32 %v411
        %vm414 = vcmask 130048
        %415 = vst.msk [vmem:[#allocation2] sm:$0xff] %vm414, %v412
        %416 = vst.msk [vmem:[#allocation2 + $0x8] sm:$0xff] %vm414, %v413
        %v417 = vmul.f32 %v404, %v412
        %v418 = vmul.f32 %v405, %v413
        %v419 = vmul.f32 %v406, %v412
        %v420 = vmul.f32 %v407, %v413
        %v421 = vadd.f32 %v417, 1e-06
        %v422 = vadd.f32 %v418, 1e-06
        %v423 = vadd.f32 %v419, 1e-06
        %v424 = vadd.f32 %v420, 1e-06
        %v425 = vrcp.pop %v423
        %v426 = vrcp.pop %v424
        %v427 = vmul.f32 %v421, %v425
        %v428 = vmul.f32 %v422, %v426
        %v429 = vlog2.pop %v427
        %v430 = vmul.f32 %v429, 0.6931472
        %v431 = vlog2.pop %v428
        %v432 = vmul.f32 %v431, 0.6931472
        %v433 = vmul.f32 %v430, %v412
        %v434 = vmul.f32 %v432, %v413
        %v435 = vsel %vm414, %v412, 0.0
        %v436 = vsel %vm414, %v413, 0.0
        %v437 = vadd.f32 %v435, %v436
        %438 = vadd.xlane.f32.xlu0 %v437
        %v439 = vpop.xlane.xlu0 %438
        %v440 = vrot.slane %v439, 4
        %v441 = vadd.f32 %v439, %v440
        %v442 = vrot.slane %v441, 2
        %v443 = vadd.f32 %v441, %v442
        %v444 = vrot.slane %v443, 1
        %v445 = vadd.f32 %v443, %v444
        %s446 = vtos %v445
        %v447 = vsel %vm414, %v433, 0.0
        %v448 = vsel %vm414, %v434, 0.0
        %v449 = vadd.f32 %v447, %v448
        %450 = vadd.xlane.f32.xlu0 %v449
        %v451 = vpop.xlane.xlu0 %450
        %v452 = vrot.slane %v451, 4
        %v453 = vadd.f32 %v451, %v452
        %v454 = vrot.slane %v453, 2
        %v455 = vadd.f32 %v453, %v454
        %v456 = vrot.slane %v455, 1
        %v457 = vadd.f32 %v455, %v456
        %s458 = vtos %v457
        %v459 = vmul.f32 %v433, %v433
        %v460 = vmul.f32 %v434, %v434
        %v461 = vsel %vm414, %v459, 0.0
        %v462 = vsel %vm414, %v460, 0.0
        %v463 = vadd.f32 %v461, %v462
        %464 = vadd.xlane.f32.xlu0 %v463
        %v465 = vpop.xlane.xlu0 %464
        %v466 = vrot.slane %v465, 4
        %v467 = vadd.f32 %v465, %v466
        %v468 = vrot.slane %v467, 2
        %v469 = vadd.f32 %v467, %v468
        %v470 = vrot.slane %v469, 1
        %v471 = vadd.f32 %v469, %v470
        %s472 = vtos %v471
        %v473 = vld [vmem:[%s2] sm:$0xff]
        %v474 = vld [vmem:[%s2 + $0x8] sm:$0xff]
        %v475 = vld [vmem:[%s3] sm:$0xff]
        %v477 = vsel %vm414, %v404, 0
        %v480 = vsel %vm414, %v405, 0
        %482 = vmatpush.msra.mxu0 0.0
        %483 = vmatpush.msra.mxu0 0.0
        %484 = vmatpush.msra.mxu0 0.0
        %485 = vmatpush.msra.mxu0 0.0
        %486 = vmatpush.msra.mxu0 0.0
        %487 = vmatpush.msra.mxu0 0.0
        %488 = vmatpush.msra.mxu0 0.0
        %489 = vmatpush.msra.mxu0 0.0
        %490 = vmatpush.msra.mxu0 0.0
        %491 = vmatpush.msra.mxu0 0.0
        %492 = vmatpush.msra.mxu0 0.0
        %493 = vmatpush.msra.mxu0 0.0
        %494 = vmatpush.msra.mxu0 0.0
        %495 = vmatpush.msra.mxu0 0.0
        %496 = vmatpush.msra.mxu0 %v474
        %497 = vmatpush.msra.mxu0 %v473
        %498 = vmatmul.f32.gmra.mxu0 %v477
        %v499 = vpop.f32.mrf.mxu0
        %v500 = vadd.f32 0.0, %v499
        %501 = vmatmul.f32.gmra.mxu0 %v480
        %v502 = vpop.f32.mrf.mxu0
        %v503 = vadd.f32 0.0, %v502
        %504 = vdwg.mxu0
        %v506 = vsel %vm414, %v475, 0
        %508 = vmatpush.msra.mxu0 0.0
        %509 = vmatpush.msra.mxu0 0.0
        %510 = vmatpush.msra.mxu0 0.0
        %511 = vmatpush.msra.mxu0 0.0
        %512 = vmatpush.msra.mxu0 0.0
        %513 = vmatpush.msra.mxu0 0.0
        %514 = vmatpush.msra.mxu0 0.0
        %515 = vmatpush.msra.mxu0 0.0
        %516 = vmatpush.msra.mxu0 0.0
        %517 = vmatpush.msra.mxu0 0.0
        %518 = vmatpush.msra.mxu0 0.0
        %519 = vmatpush.msra.mxu0 0.0
        %520 = vmatpush.msra.mxu0 0.0
        %521 = vmatpush.msra.mxu0 0.0
        %522 = vmatpush.msra.mxu0 %v503
        %523 = vmatpush.msra.mxu0 %v500
        %524 = vmatmul.f32.gmra.mxu0 %v506
        %v525 = vpop.f32.mrf.mxu0
        %v526 = vadd.f32 0.0, %v525
        %527 = vdwg.mxu0
        %v529 = vsel %vm414, %v406, 0
        %v532 = vsel %vm414, %v407, 0
        %534 = vmatpush.msra.mxu0 0.0
        %535 = vmatpush.msra.mxu0 0.0
        %536 = vmatpush.msra.mxu0 0.0
        %537 = vmatpush.msra.mxu0 0.0
        %538 = vmatpush.msra.mxu0 0.0
        %539 = vmatpush.msra.mxu0 0.0
        %540 = vmatpush.msra.mxu0 0.0
        %541 = vmatpush.msra.mxu0 0.0
        %542 = vmatpush.msra.mxu0 0.0
        %543 = vmatpush.msra.mxu0 0.0
        %544 = vmatpush.msra.mxu0 0.0
        %545 = vmatpush.msra.mxu0 0.0
        %546 = vmatpush.msra.mxu0 0.0
        %547 = vmatpush.msra.mxu0 0.0
        %548 = vmatpush.msra.mxu0 %v474
        %549 = vmatpush.msra.mxu0 %v473
        %550 = vmatmul.f32.gmra.mxu0 %v529
        %v551 = vpop.f32.mrf.mxu0
        %v552 = vadd.f32 0.0, %v551
        %553 = vmatmul.f32.gmra.mxu0 %v532
        %v554 = vpop.f32.mrf.mxu0
        %v555 = vadd.f32 0.0, %v554
        %556 = vdwg.mxu0
        %557 = vmatpush.msra.mxu0 0.0
        %558 = vmatpush.msra.mxu0 0.0
        %559 = vmatpush.msra.mxu0 0.0
        %560 = vmatpush.msra.mxu0 0.0
        %561 = vmatpush.msra.mxu0 0.0
        %562 = vmatpush.msra.mxu0 0.0
        %563 = vmatpush.msra.mxu0 0.0
        %564 = vmatpush.msra.mxu0 0.0
        %565 = vmatpush.msra.mxu0 0.0
        %566 = vmatpush.msra.mxu0 0.0
        %567 = vmatpush.msra.mxu0 0.0
        %568 = vmatpush.msra.mxu0 0.0
        %569 = vmatpush.msra.mxu0 0.0
        %570 = vmatpush.msra.mxu0 0.0
        %571 = vmatpush.msra.mxu0 %v555
        %572 = vmatpush.msra.mxu0 %v552
        %573 = vmatmul.f32.gmra.mxu0 %v506
        %v574 = vpop.f32.mrf.mxu0
        %v575 = vadd.f32 0.0, %v574
        %576 = vdwg.mxu0
        %v577 = vld [vmem:[%s4] sm:$0xff]
        %v578 = vld [vmem:[%s4 + $0x8] sm:$0xff]
        %v579 = vld [vmem:[#allocation2] ss:$2 sm:$0xff]
        %v581 = vsel %vm414, %v579, 0
        %583 = vmatpush.msra.mxu0 0.0
        %584 = vmatpush.msra.mxu0 0.0
        %585 = vmatpush.msra.mxu0 0.0
        %586 = vmatpush.msra.mxu0 0.0
        %587 = vmatpush.msra.mxu0 0.0
        %588 = vmatpush.msra.mxu0 0.0
        %589 = vmatpush.msra.mxu0 0.0
        %590 = vmatpush.msra.mxu0 0.0
        %591 = vmatpush.msra.mxu0 0.0
        %592 = vmatpush.msra.mxu0 0.0
        %593 = vmatpush.msra.mxu0 0.0
        %594 = vmatpush.msra.mxu0 0.0
        %595 = vmatpush.msra.mxu0 0.0
        %596 = vmatpush.msra.mxu0 0.0
        %597 = vmatpush.msra.mxu0 %v578
        %598 = vmatpush.msra.mxu0 %v577
        %599 = vmatmul.f32.gmra.mxu0 %v581
        %v600 = vpop.f32.mrf.mxu0
        %v601 = vadd.f32 0.0, %v600
        %602 = vdwg.mxu0
        %v603 = vmul.f32 %v526, %v601
        %v604 = vmul.f32 %v575, %v601
        %v605 = vadd.f32 %v603, 1e-06
        %v606 = vadd.f32 %v604, 1e-06
        %v607 = vrcp.pop %v606
        %v608 = vmul.f32 %v605, %v607
        %v609 = vlog2.pop %v608
        %v610 = vmul.f32 %v609, 0.6931472
        %v611 = vmul.f32 %v610, %v601
        %vm612 = vcmask 64512
        %v613 = vsel %vm612, %v601, 0.0
        %614 = vadd.xlane.f32.xlu0 %v613
        %v615 = vpop.xlane.xlu0 %614
        %v616 = vrot.slane %v615, 4
        %v617 = vadd.f32 %v615, %v616
        %v618 = vrot.slane %v617, 2
        %v619 = vadd.f32 %v617, %v618
        %v620 = vrot.slane %v619, 1
        %v621 = vadd.f32 %v619, %v620
        %s622 = vtos %v621
        %v623 = vsel %vm612, %v611, 0.0
        %624 = vadd.xlane.f32.xlu0 %v623
        %v625 = vpop.xlane.xlu0 %624
        %v626 = vrot.slane %v625, 4
        %v627 = vadd.f32 %v625, %v626
        %v628 = vrot.slane %v627, 2
        %v629 = vadd.f32 %v627, %v628
        %v630 = vrot.slane %v629, 1
        %v631 = vadd.f32 %v629, %v630
        %s632 = vtos %v631
        %v633 = vmul.f32 %v611, %v611
        %v634 = vsel %vm612, %v633, 0.0
        %635 = vadd.xlane.f32.xlu0 %v634
        %v636 = vpop.xlane.xlu0 %635
        %v637 = vrot.slane %v636, 4
        %v638 = vadd.f32 %v636, %v637
        %v639 = vrot.slane %v638, 2
        %v640 = vadd.f32 %v638, %v639
        %v641 = vrot.slane %v640, 1
        %v642 = vadd.f32 %v640, %v641
        %s643 = vtos %v642
        %v644 = vld [vmem:[%s5] sm:$0xff]
        %v645 = vld [vmem:[%s6] sm:$0xf]
        %v647 = vsel %vm612, %v526, 0
        %649 = vmatpush.msra.mxu0 0.0
        %650 = vmatpush.msra.mxu0 0.0
        %651 = vmatpush.msra.mxu0 0.0
        %652 = vmatpush.msra.mxu0 0.0
        %653 = vmatpush.msra.mxu0 0.0
        %654 = vmatpush.msra.mxu0 0.0
        %655 = vmatpush.msra.mxu0 0.0
        %656 = vmatpush.msra.mxu0 0.0
        %657 = vmatpush.msra.mxu0 0.0
        %658 = vmatpush.msra.mxu0 0.0
        %659 = vmatpush.msra.mxu0 0.0
        %660 = vmatpush.msra.mxu0 0.0
        %661 = vmatpush.msra.mxu0 0.0
        %662 = vmatpush.msra.mxu0 0.0
        %663 = vmatpush.msra.mxu0 0.0
        %664 = vmatpush.msra.mxu0 %v644
        %665 = vmatmul.f32.gmra.mxu0 %v647
        %v666 = vpop.f32.mrf.mxu0
        %v667 = vadd.f32 0.0, %v666
        %668 = vdwg.mxu0
        %v670 = vsel %vm612, %v645, 0
        %672 = vmatpush.msra.mxu0 0.0
        %673 = vmatpush.msra.mxu0 0.0
        %674 = vmatpush.msra.mxu0 0.0
        %675 = vmatpush.msra.mxu0 0.0
        %676 = vmatpush.msra.mxu0 0.0
        %677 = vmatpush.msra.mxu0 0.0
        %678 = vmatpush.msra.mxu0 0.0
        %679 = vmatpush.msra.mxu0 0.0
        %680 = vmatpush.msra.mxu0 0.0
        %681 = vmatpush.msra.mxu0 0.0
        %682 = vmatpush.msra.mxu0 0.0
        %683 = vmatpush.msra.mxu0 0.0
        %684 = vmatpush.msra.mxu0 0.0
        %685 = vmatpush.msra.mxu0 0.0
        %686 = vmatpush.msra.mxu0 0.0
        %687 = vmatpush.msra.mxu0 %v667
        %688 = vmatmul.f32.gmra.mxu0 %v670
        %v689 = vpop.f32.mrf.mxu0
        %v690 = vadd.f32 0.0, %v689
        %691 = vdwg.mxu0
        %v693 = vsel %vm612, %v575, 0
        %695 = vmatpush.msra.mxu0 0.0
        %696 = vmatpush.msra.mxu0 0.0
        %697 = vmatpush.msra.mxu0 0.0
        %698 = vmatpush.msra.mxu0 0.0
        %699 = vmatpush.msra.mxu0 0.0
        %700 = vmatpush.msra.mxu0 0.0
        %701 = vmatpush.msra.mxu0 0.0
        %702 = vmatpush.msra.mxu0 0.0
        %703 = vmatpush.msra.mxu0 0.0
        %704 = vmatpush.msra.mxu0 0.0
        %705 = vmatpush.msra.mxu0 0.0
        %706 = vmatpush.msra.mxu0 0.0
        %707 = vmatpush.msra.mxu0 0.0
        %708 = vmatpush.msra.mxu0 0.0
        %709 = vmatpush.msra.mxu0 0.0
        %710 = vmatpush.msra.mxu0 %v644
        %711 = vmatmul.f32.gmra.mxu0 %v693
        %v712 = vpop.f32.mrf.mxu0
        %v713 = vadd.f32 0.0, %v712
        %714 = vdwg.mxu0
        %715 = vmatpush.msra.mxu0 0.0
        %716 = vmatpush.msra.mxu0 0.0
        %717 = vmatpush.msra.mxu0 0.0
        %718 = vmatpush.msra.mxu0 0.0
        %719 = vmatpush.msra.mxu0 0.0
        %720 = vmatpush.msra.mxu0 0.0
        %721 = vmatpush.msra.mxu0 0.0
        %722 = vmatpush.msra.mxu0 0.0
        %723 = vmatpush.msra.mxu0 0.0
        %724 = vmatpush.msra.mxu0 0.0
        %725 = vmatpush.msra.mxu0 0.0
        %726 = vmatpush.msra.mxu0 0.0
        %727 = vmatpush.msra.mxu0 0.0
        %728 = vmatpush.msra.mxu0 0.0
        %729 = vmatpush.msra.mxu0 0.0
        %730 = vmatpush.msra.mxu0 %v713
        %731 = vmatmul.f32.gmra.mxu0 %v670
        %v732 = vpop.f32.mrf.mxu0
        %v733 = vadd.f32 0.0, %v732
        %734 = vdwg.mxu0
        %v735 = vld [vmem:[%s7] sm:$0xff]
        %v736 = vld [vmem:[%s7 + $0x8] sm:$0xff]
        %v737 = vld [vmem:[#allocation2] ss:$4 sm:$0xf]
        %v739 = vsel %vm414, %v737, 0
        %741 = vmatpush.msra.mxu0 0.0
        %742 = vmatpush.msra.mxu0 0.0
        %743 = vmatpush.msra.mxu0 0.0
        %744 = vmatpush.msra.mxu0 0.0
        %745 = vmatpush.msra.mxu0 0.0
        %746 = vmatpush.msra.mxu0 0.0
        %747 = vmatpush.msra.mxu0 0.0
        %748 = vmatpush.msra.mxu0 0.0
        %749 = vmatpush.msra.mxu0 0.0
        %750 = vmatpush.msra.mxu0 0.0
        %751 = vmatpush.msra.mxu0 0.0
        %752 = vmatpush.msra.mxu0 0.0
        %753 = vmatpush.msra.mxu0 0.0
        %754 = vmatpush.msra.mxu0 0.0
        %755 = vmatpush.msra.mxu0 %v736
        %756 = vmatpush.msra.mxu0 %v735
        %757 = vmatmul.f32.gmra.mxu0 %v739
        %v758 = vpop.f32.mrf.mxu0
        %v759 = vadd.f32 0.0, %v758
        %760 = vdwg.mxu0
        %v761 = vmul.f32 %v690, %v759
        %v762 = vmul.f32 %v733, %v759
        %v763 = vadd.f32 %v761, 1e-06
        %v764 = vadd.f32 %v762, 1e-06
        %v765 = vrcp.pop %v764
        %v766 = vmul.f32 %v763, %v765
        %v767 = vlog2.pop %v766
        %v768 = vmul.f32 %v767, 0.6931472
        %v769 = vmul.f32 %v768, %v759
        %vm770 = vcmask 27648
        %v771 = vsel %vm770, %v759, 0.0
        %772 = vadd.xlane.f32.xlu0 %v771
        %v773 = vpop.xlane.xlu0 %772
        %v774 = vrot.slane %v773, 4
        %v775 = vadd.f32 %v773, %v774
        %v776 = vrot.slane %v775, 2
        %v777 = vadd.f32 %v775, %v776
        %v778 = vrot.slane %v777, 1
        %v779 = vadd.f32 %v777, %v778
        %s780 = vtos %v779
        %v781 = vsel %vm770, %v769, 0.0
        %782 = vadd.xlane.f32.xlu0 %v781
        %v783 = vpop.xlane.xlu0 %782
        %v784 = vrot.slane %v783, 4
        %v785 = vadd.f32 %v783, %v784
        %v786 = vrot.slane %v785, 2
        %v787 = vadd.f32 %v785, %v786
        %v788 = vrot.slane %v787, 1
        %v789 = vadd.f32 %v787, %v788
        %s790 = vtos %v789
        %v791 = vmul.f32 %v769, %v769
        %v792 = vsel %vm770, %v791, 0.0
        %793 = vadd.xlane.f32.xlu0 %v792
        %v794 = vpop.xlane.xlu0 %793
        %v795 = vrot.slane %v794, 4
        %v796 = vadd.f32 %v794, %v795
        %v797 = vrot.slane %v796, 2
        %v798 = vadd.f32 %v796, %v797
        %v799 = vrot.slane %v798, 1
        %v800 = vadd.f32 %v798, %v799
        %s801 = vtos %v800
        %v802 = vld [vmem:[%s8] sm:$0xf]
        %v803 = vld [vmem:[%s9] sm:$0x3]
        %vm804 = vcmask 31744
        %v806 = vsel %vm804, %v690, 0
        %vm808 = vcmask 1043456
        %v810 = vsel %vm808, %v802, 0
        %812 = vmatpush.msra.mxu0 0.0
        %813 = vmatpush.msra.mxu0 0.0
        %814 = vmatpush.msra.mxu0 0.0
        %815 = vmatpush.msra.mxu0 0.0
        %816 = vmatpush.msra.mxu0 0.0
        %817 = vmatpush.msra.mxu0 0.0
        %818 = vmatpush.msra.mxu0 0.0
        %819 = vmatpush.msra.mxu0 0.0
        %820 = vmatpush.msra.mxu0 0.0
        %821 = vmatpush.msra.mxu0 0.0
        %822 = vmatpush.msra.mxu0 0.0
        %823 = vmatpush.msra.mxu0 0.0
        %824 = vmatpush.msra.mxu0 0.0
        %825 = vmatpush.msra.mxu0 0.0
        %826 = vmatpush.msra.mxu0 0.0
        %827 = vmatpush.msra.mxu0 %v810
        %828 = vmatmul.f32.gmra.mxu0 %v806
        %v829 = vpop.f32.mrf.mxu0
        %v830 = vadd.f32 0.0, %v829
        %831 = vdwg.mxu0
        %v833 = vsel %vm804, %v803, 0
        %v836 = vsel %vm808, %v830, 0
        %838 = vmatpush.msra.mxu0 0.0
        %839 = vmatpush.msra.mxu0 0.0
        %840 = vmatpush.msra.mxu0 0.0
        %841 = vmatpush.msra.mxu0 0.0
        %842 = vmatpush.msra.mxu0 0.0
        %843 = vmatpush.msra.mxu0 0.0
        %844 = vmatpush.msra.mxu0 0.0
        %845 = vmatpush.msra.mxu0 0.0
        %846 = vmatpush.msra.mxu0 0.0
        %847 = vmatpush.msra.mxu0 0.0
        %848 = vmatpush.msra.mxu0 0.0
        %849 = vmatpush.msra.mxu0 0.0
        %850 = vmatpush.msra.mxu0 0.0
        %851 = vmatpush.msra.mxu0 0.0
        %852 = vmatpush.msra.mxu0 0.0
        %853 = vmatpush.msra.mxu0 %v836
        %854 = vmatmul.f32.gmra.mxu0 %v833
        %v855 = vpop.f32.mrf.mxu0
        %v856 = vadd.f32 0.0, %v855
        %857 = vdwg.mxu0
        %v859 = vsel %vm804, %v733, 0
        %861 = vmatpush.msra.mxu0 0.0
        %862 = vmatpush.msra.mxu0 0.0
        %863 = vmatpush.msra.mxu0 0.0
        %864 = vmatpush.msra.mxu0 0.0
        %865 = vmatpush.msra.mxu0 0.0
        %866 = vmatpush.msra.mxu0 0.0
        %867 = vmatpush.msra.mxu0 0.0
        %868 = vmatpush.msra.mxu0 0.0
        %869 = vmatpush.msra.mxu0 0.0
        %870 = vmatpush.msra.mxu0 0.0
        %871 = vmatpush.msra.mxu0 0.0
        %872 = vmatpush.msra.mxu0 0.0
        %873 = vmatpush.msra.mxu0 0.0
        %874 = vmatpush.msra.mxu0 0.0
        %875 = vmatpush.msra.mxu0 0.0
        %876 = vmatpush.msra.mxu0 %v810
        %877 = vmatmul.f32.gmra.mxu0 %v859
        %v878 = vpop.f32.mrf.mxu0
        %v879 = vadd.f32 0.0, %v878
        %880 = vdwg.mxu0
        %v882 = vsel %vm808, %v879, 0
        %884 = vmatpush.msra.mxu0 0.0
        %885 = vmatpush.msra.mxu0 0.0
        %886 = vmatpush.msra.mxu0 0.0
        %887 = vmatpush.msra.mxu0 0.0
        %888 = vmatpush.msra.mxu0 0.0
        %889 = vmatpush.msra.mxu0 0.0
        %890 = vmatpush.msra.mxu0 0.0
        %891 = vmatpush.msra.mxu0 0.0
        %892 = vmatpush.msra.mxu0 0.0
        %893 = vmatpush.msra.mxu0 0.0
        %894 = vmatpush.msra.mxu0 0.0
        %895 = vmatpush.msra.mxu0 0.0
        %896 = vmatpush.msra.mxu0 0.0
        %897 = vmatpush.msra.mxu0 0.0
        %898 = vmatpush.msra.mxu0 0.0
        %899 = vmatpush.msra.mxu0 %v882
        %900 = vmatmul.f32.gmra.mxu0 %v833
        %v901 = vpop.f32.mrf.mxu0
        %v902 = vadd.f32 0.0, %v901
        %903 = vdwg.mxu0
        %v904 = vld [vmem:[%s10] sm:$0xff]
        %v905 = vld [vmem:[%s10 + $0x8] sm:$0xff]
        %v906 = vld [vmem:[#allocation2] ss:$8 sm:$0x3]
        %v908 = vsel %vm414, %v906, 0
        %910 = vmatpush.msra.mxu0 0.0
        %911 = vmatpush.msra.mxu0 0.0
        %912 = vmatpush.msra.mxu0 0.0
        %913 = vmatpush.msra.mxu0 0.0
        %914 = vmatpush.msra.mxu0 0.0
        %915 = vmatpush.msra.mxu0 0.0
        %916 = vmatpush.msra.mxu0 0.0
        %917 = vmatpush.msra.mxu0 0.0
        %918 = vmatpush.msra.mxu0 0.0
        %919 = vmatpush.msra.mxu0 0.0
        %920 = vmatpush.msra.mxu0 0.0
        %921 = vmatpush.msra.mxu0 0.0
        %922 = vmatpush.msra.mxu0 0.0
        %923 = vmatpush.msra.mxu0 0.0
        %924 = vmatpush.msra.mxu0 %v905
        %925 = vmatpush.msra.mxu0 %v904
        %926 = vmatmul.f32.gmra.mxu0 %v908
        %v927 = vpop.f32.mrf.mxu0
        %v928 = vadd.f32 0.0, %v927
        %929 = vdwg.mxu0
        %v930 = vmul.f32 %v856, %v928
        %v931 = vmul.f32 %v902, %v928
        %v932 = vadd.f32 %v930, 1e-06
        %v933 = vadd.f32 %v931, 1e-06
        %v934 = vrcp.pop %v933
        %v935 = vmul.f32 %v932, %v934
        %v936 = vlog2.pop %v935
        %v937 = vmul.f32 %v936, 0.6931472
        %v938 = vmul.f32 %v937, %v928
        %vm939 = vcmask 9216
        %v940 = vsel %vm939, %v928, 0.0
        %941 = vadd.xlane.f32.xlu0 %v940
        %v942 = vpop.xlane.xlu0 %941
        %v943 = vrot.slane %v942, 4
        %v944 = vadd.f32 %v942, %v943
        %v945 = vrot.slane %v944, 2
        %v946 = vadd.f32 %v944, %v945
        %v947 = vrot.slane %v946, 1
        %v948 = vadd.f32 %v946, %v947
        %s949 = vtos %v948
        %v950 = vsel %vm939, %v938, 0.0
        %951 = vadd.xlane.f32.xlu0 %v950
        %v952 = vpop.xlane.xlu0 %951
        %v953 = vrot.slane %v952, 4
        %v954 = vadd.f32 %v952, %v953
        %v955 = vrot.slane %v954, 2
        %v956 = vadd.f32 %v954, %v955
        %v957 = vrot.slane %v956, 1
        %v958 = vadd.f32 %v956, %v957
        %s959 = vtos %v958
        %v960 = vmul.f32 %v938, %v938
        %v961 = vsel %vm939, %v960, 0.0
        %962 = vadd.xlane.f32.xlu0 %v961
        %v963 = vpop.xlane.xlu0 %962
        %v964 = vrot.slane %v963, 4
        %v965 = vadd.f32 %v963, %v964
        %v966 = vrot.slane %v965, 2
        %v967 = vadd.f32 %v965, %v966
        %v968 = vrot.slane %v967, 1
        %v969 = vadd.f32 %v967, %v968
        %s970 = vtos %v969
        %v971 = vlaneseq
        %v972 = vand.u32 %v971, 127
        %vm973 = vcmp.eq.s32.totalorder %v972, 0
        %v974 = vstv %s446
        %v975 = vsel %vm973, %v974, 0.0
        %vm976 = vcmp.eq.s32.totalorder %v972, 1
        %v977 = vstv %s458
        %v978 = vsel %vm976, %v977, %v975
        %vm979 = vcmp.eq.s32.totalorder %v972, 2
        %v980 = vstv %s472
        %v981 = vsel %vm979, %v980, %v978
        %vm982 = vcmp.eq.s32.totalorder %v972, 3
        %v983 = vstv %s622
        %v984 = vsel %vm982, %v983, %v981
        %vm985 = vcmp.eq.s32.totalorder %v972, 4
        %v986 = vstv %s632
        %v987 = vsel %vm985, %v986, %v984
        %vm988 = vcmp.eq.s32.totalorder %v972, 5
        %v989 = vstv %s643
        %v990 = vsel %vm988, %v989, %v987
        %vm991 = vcmp.eq.s32.totalorder %v972, 6
        %v992 = vstv %s780
        %v993 = vsel %vm991, %v992, %v990
        %vm994 = vcmp.eq.s32.totalorder %v972, 7
        %v995 = vstv %s790
        %v996 = vsel %vm994, %v995, %v993
        %vm997 = vcmp.eq.s32.totalorder %v972, 8
        %v998 = vstv %s801
        %v999 = vsel %vm997, %v998, %v996
        %vm1000 = vcmp.eq.s32.totalorder %v972, 9
        %v1001 = vstv %s949
        %v1002 = vsel %vm1000, %v1001, %v999
        %vm1003 = vcmp.eq.s32.totalorder %v972, 10
        %v1004 = vstv %s959
        %v1005 = vsel %vm1003, %v1004, %v1002
        %vm1006 = vcmp.eq.s32.totalorder %v972, 11
        %v1007 = vstv %s970
        %v1008 = vsel %vm1006, %v1007, %v1005
        %vm1009 = vcmask 90112
        %1010 = vst.msk [vmem:[%s393] sm:$0x1] %vm1009, %v1008
        %s1011 = sand.u32 %s274, 1
        %s1012 = scalar_lea.sflag [#allocation4], %s1011
        %s1013 = sand.u32 %s274, 1
        %s1014 = scalar_lea.vmem [#allocation3], %s1013
        // Predicated region
        $region65: #{tpu_custom_call.1} parent=63 // pred_check
          %p1015 = pneg %p284
        $region66: #{tpu_custom_call.1} parent=63 // pred_check_branch
          %1017 = sbr.rel (%p1015) target = $region68
        $region67: #{tpu_custom_call.1} parent=63 // pred_region
          %1019 = vsyncadd %s1012, 0
          %s1020 = scalar_lea.hbm %s11, %s25
          %s1022 = sshll.u32 %s1014, 4
          %s1023 = int_to_ptr.vmem [resolvable:$true] %s1022
          %s1024 = sshll.u32 %s1020, 4
          %s1025 = int_to_ptr.hbm [resolvable:$true] %s1024
          %1027 = dma.vmem_to_hbm [thread:$0]  %s1023, 16, %s1025, %s1012
        $region68: #{tpu_custom_call.1} parent=63 // pred_fallthru
          _
      $region64: #{tpu_custom_call.1} parent=5 // pred_fallthru
        _
      %p1028 = scmp.le.s32.totalorder 2, %s20
      // Predicated region
      $region69: #{tpu_custom_call.1} parent=5 // pred_check
        %p1029 = pneg %p1028
      $region70: #{tpu_custom_call.1} parent=5 // pred_check_branch
        %1031 = sbr.rel (%p1029) target = $region72
      $region71: #{tpu_custom_call.1} parent=5 // pred_region
        %s1032 = ssub.s32 %s20, 2
        // Predicated region
        $region73: #{tpu_custom_call.1} parent=71 // pred_check
          %p1033 = pneg %p290
        $region74: #{tpu_custom_call.1} parent=71 // pred_check_branch
          %1035 = sbr.rel (%p1033) target = $region76
        $region75: #{tpu_custom_call.1} parent=71 // pred_region
          %s1036 = sand.u32 %s275, 1
          %s1037 = scalar_lea.sflag [#allocation4], %s1036
          %s1038 = sand.u32 %s275, 1
          %s1039 = scalar_lea.vmem [#allocation3], %s1038
          %1041 = dma.done %s1037, 16
        $region76: #{tpu_custom_call.1} parent=71 // pred_fallthru
          _
      $region72: #{tpu_custom_call.1} parent=5 // pred_fallthru
        _
    $region6: #{tpu_custom_call.1} parent=1 // loop_footer
      %s24 = sadd.s32 1, %s20
    $region7: #{tpu_custom_call.1} parent=1 // loop_footer_branch
      %19 = sbr.rel target = $region3
    $region8: #{tpu_custom_call.1} parent=1 // loop_exit
      _
    %1042 = vsyncpa [#allocation4], 1
    %s1043 = scalar_lea.sflag [#allocation4], 1
    %1044 = vsyncpa %s1043, 1

</llo_original>
